<compile_context>
chip_gen: v7x
topology: tpu7x:2x2x1
jax: 0.10.0
libtpu: 0.0.40
codegen_flags: <defaults>
</compile_context>

<pallas_src>
import functools

import jax
import jax.numpy as jnp
from jax.experimental import pallas as pl
from jax.experimental.pallas import tpu as pltpu

# ----- model hyper-params (mirror the PyTorch script) -----
N_EMBD = 16
HEAD_SIZE = 4
N_HEADS = 4
HD = N_HEADS * HEAD_SIZE          # 16 (== N_EMBD, relied upon for weight packing)
HIDDEN = 4 * N_EMBD               # 64
SLAB_W = 3 * HD + N_EMBD + HIDDEN  # 128 lanes: [Wq|Wk|Wv|Wproj|W1]
LN_EPS = 1e-5
NEG_INF = -1e9
# TODO(synk): dropout(p=0.2) layers are identity (eval mode); training-mode RNG dropout not implemented.


def _layernorm(x, gamma, beta):
    mu = jnp.mean(x, axis=-1, keepdims=True)
    var = jnp.mean((x - mu) ** 2, axis=-1, keepdims=True)
    return (x - mu) * jax.lax.rsqrt(var + LN_EPS) * gamma + beta


def block_kernel(x_ref, mask_ref, slab_ref, w2_ref, o_ref, *, compute_dtype):
    Bt, T, C = x_ref.shape
    cdt = compute_dtype

    x3 = x_ref[...].astype(jnp.float32)       # (Bt, T, C)   residual path stays f32
    m = mask_ref[...]                         # (Bt, T)      0/1 validity mask
    slab = slab_ref[...]                      # (24, 128)    packed weights + vectors
    w2 = w2_ref[...]                          # (HIDDEN, C)

    # ---- unpack weight slab (static slices of the already-loaded value) ----
    wqkv = slab[:C, :3 * HD]                              # (C, 48)  [Wq|Wk|Wv]
    wproj = slab[:C, 3 * HD:3 * HD + C]                   # (HD, C)
    w1 = slab[:C, 3 * HD + C:3 * HD + C + HIDDEN]         # (C, HIDDEN)
    pr = slab[C:C + 8, :].astype(jnp.float32)             # packed vector rows
    ln1_g = pr[0:1, :C]
    ln1_b = pr[1:2, :C]
    ln2_g = pr[2:3, :C]
    ln2_b = pr[3:4, :C]
    bproj = pr[4:5, :C]
    b2 = pr[5:6, :C]
    b1 = pr[6:7, :HIDDEN]

    xf = x3.reshape(Bt * T, C)                # flatten batch rows for dense matmuls

    # ---- ln1 + fused QKV projection ----
    h = _layernorm(xf, ln1_g, ln1_b)
    qkv = jnp.dot(h.astype(cdt), wqkv, preferred_element_type=jnp.float32)   # (Bt*T, 48)
    qkv = qkv.reshape(Bt, T, 3 * HD)

    # ---- multi-head attention, heads folded into the batch axis ----
    # stacks are head-major: batch index b' = h*Bt + b
    q_hb = jnp.concatenate(
        [qkv[:, :, hh * HEAD_SIZE:(hh + 1) * HEAD_SIZE] for hh in range(N_HEADS)], axis=0)
    k_hb = jnp.concatenate(
        [qkv[:, :, HD + hh * HEAD_SIZE:HD + (hh + 1) * HEAD_SIZE] for hh in range(N_HEADS)], axis=0)
    v_hb = jnp.concatenate(
        [qkv[:, :, 2 * HD + hh * HEAD_SIZE:2 * HD + (hh + 1) * HEAD_SIZE] for hh in range(N_HEADS)], axis=0)

    # keep-mask built in-kernel (no (B,T,T) HBM traffic); replicate per head.
    m_hb = jnp.concatenate([m] * N_HEADS, axis=0)                       # (H*Bt, T)
    keep = (m_hb[:, :, None] > 0.5) & (m_hb[:, None, :] > 0.5)          # (H*Bt, T, T)

    scale = 1.0 / (HEAD_SIZE ** 0.5)
    wei = jnp.einsum('bqd,bkd->bqk', q_hb.astype(cdt), k_hb.astype(cdt),
                     preferred_element_type=jnp.float32) * scale        # (H*Bt, T, T)
    wei = jnp.where(keep, wei, NEG_INF)                                 # fill semantics
    wei = wei - jnp.max(wei, axis=-1, keepdims=True)
    pw = jnp.exp(wei)
    pw = pw / jnp.sum(pw, axis=-1, keepdims=True)
    out_hb = jnp.einsum('bqk,bkd->bqd', pw.astype(cdt), v_hb.astype(cdt),
                        preferred_element_type=jnp.float32)             # (H*Bt, T, hs)

    attn = jnp.concatenate(
        [out_hb[hh * Bt:(hh + 1) * Bt] for hh in range(N_HEADS)], axis=-1)  # (Bt, T, HD)
    attn = attn.reshape(Bt * T, HD)
    attn = jnp.dot(attn.astype(cdt), wproj, preferred_element_type=jnp.float32) + bproj

    xf = xf + attn                            # residual 1

    # ---- ln2 + feed-forward ----
    h2 = _layernorm(xf, ln2_g, ln2_b)
    hid = jnp.maximum(jnp.dot(h2.astype(cdt), w1, preferred_element_type=jnp.float32) + b1, 0.0)
    ff = jnp.dot(hid.astype(cdt), w2, preferred_element_type=jnp.float32) + b2

    o_ref[...] = (xf + ff).reshape(Bt, T, C).astype(o_ref.dtype)        # residual 2


def _pick_b_tile(B, T):
    """Whole batch for small B; for large B, an 8-aligned tile with >=256 rows/step
    that leaves >=2 'parallel' grid steps (v7x megacore) and bounded VMEM/step."""
    cands = [B] + [d for d in range(8, B, 8) if B % d == 0]
    ok = [d for d in cands if d * T <= 4096] or [min(cands)]
    b_tile = max(ok)
    two_step = [d for d in ok if B // d >= 2 and d * T >= 256]
    if two_step:
        b_tile = max(two_step)
    return b_tile


def block_forward(x, mask, params, b_tile=None, compute_dtype=jnp.float32):
    (ln1_g, ln1_b, ln2_g, ln2_b, wq, wk, wv, wproj, bproj, w1, b1, w2, b2) = params
    B, T, C = x.shape
    assert C == N_EMBD and HD == C, "weight packing assumes n_heads*head_size == n_embd"

    if b_tile is None:
        b_tile = _pick_b_tile(B, T)
    assert B % b_tile == 0
    assert b_tile == B or b_tile % 8 == 0, "partial-batch tiles must be 8-row aligned"

    # ---- coalesce all parameters into ONE lane-dense (24, 128) slab + W2 ----
    w_rows = jnp.concatenate([wq, wk, wv, wproj, w1], axis=1).astype(jnp.float32)  # (16, 128)

    def _row(v):
        v = v.reshape(1, -1).astype(jnp.float32)
        return jnp.pad(v, ((0, 0), (0, SLAB_W - v.shape[1])))

    p_rows = jnp.concatenate(
        [_row(ln1_g), _row(ln1_b), _row(ln2_g), _row(ln2_b),
         _row(bproj), _row(b2), _row(b1), jnp.zeros((1, SLAB_W), jnp.float32)],
        axis=0)                                                                    # (8, 128)
    slab = jnp.concatenate([w_rows, p_rows], axis=0).astype(compute_dtype)         # (24, 128)

    kernel = functools.partial(block_kernel, compute_dtype=compute_dtype)
    full = lambda shape: pl.BlockSpec(shape, lambda b: (0,) * len(shape))

    return pl.pallas_call(
        kernel,
        out_shape=jax.ShapeDtypeStruct((B, T, C), jnp.float32),
        grid=(B // b_tile,),
        in_specs=[
            pl.BlockSpec((b_tile, T, C), lambda b: (b, 0, 0)),   # x
            pl.BlockSpec((b_tile, T), lambda b: (b, 0)),         # (B, T) validity mask
            full(slab.shape),                                    # packed weights + vectors
            full(w2.shape),                                      # W2
        ],
        out_specs=pl.BlockSpec((b_tile, T, C), lambda b: (b, 0, 0)),
        compiler_params=pltpu.CompilerParams(dimension_semantics=("parallel",)),
    )(x.astype(jnp.float32), mask.astype(jnp.float32), slab, w2.astype(compute_dtype))


def init_params(key):
    ks = jax.random.split(key, 12)
    scale = 0.1
    wq = scale * jax.random.normal(ks[0], (N_EMBD, HD), jnp.float32)
    wk = scale * jax.random.normal(ks[1], (N_EMBD, HD), jnp.float32)
    wv = scale * jax.random.normal(ks[2], (N_EMBD, HD), jnp.float32)
    wproj = scale * jax.random.normal(ks[3], (HD, N_EMBD), jnp.float32)
    bproj = scale * jax.random.normal(ks[4], (1, N_EMBD), jnp.float32)
    w1 = scale * jax.random.normal(ks[5], (N_EMBD, HIDDEN), jnp.float32)
    b1 = scale * jax.random.normal(ks[6], (1, HIDDEN), jnp.float32)
    w2 = scale * jax.random.normal(ks[7], (HIDDEN, N_EMBD), jnp.float32)
    b2 = scale * jax.random.normal(ks[8], (1, N_EMBD), jnp.float32)
    ln1_g = jnp.ones((1, N_EMBD), jnp.float32)
    ln1_b = jnp.zeros((1, N_EMBD), jnp.float32)
    ln2_g = jnp.ones((1, N_EMBD), jnp.float32)
    ln2_b = jnp.zeros((1, N_EMBD), jnp.float32)
    return (ln1_g, ln1_b, ln2_g, ln2_b, wq, wk, wv, wproj, bproj, w1, b1, w2, b2)


def reference_forward(x, mask, params):
    (ln1_g, ln1_b, ln2_g, ln2_b, wq, wk, wv, wproj, bproj, w1, b1, w2, b2) = params

    def ln(v, g, b):
        mu = jnp.mean(v, -1, keepdims=True)
        var = jnp.mean((v - mu) ** 2, -1, keepdims=True)
        return (v - mu) * jax.lax.rsqrt(var + LN_EPS) * g + b

    h = ln(x, ln1_g, ln1_b)
    B, T, C = x.shape
    q = (h @ wq).reshape(B, T, N_HEADS, HEAD_SIZE).transpose(0, 2, 1, 3)
    k = (h @ wk).reshape(B, T, N_HEADS, HEAD_SIZE).transpose(0, 2, 1, 3)
    v = (h @ wv).reshape(B, T, N_HEADS, HEAD_SIZE).transpose(0, 2, 1, 3)
    wei = jnp.einsum("bhqd,bhkd->bhqk", q, k) / (HEAD_SIZE ** 0.5)
    mc = (mask[:, None, :, None] * mask[:, None, None, :])
    wei = jnp.where(mc == 0, NEG_INF, wei)
    wei = jax.nn.softmax(wei, axis=-1)
    out = jnp.einsum("bhqk,bhkd->bhqd", wei, v).transpose(0, 2, 1, 3).reshape(B, T, -1)
    x = x + out @ wproj + bproj
    h2 = ln(x, ln2_g, ln2_b)
    ff = jnp.maximum(h2 @ w1 + b1, 0.0) @ w2 + b2
    return x + ff


if __name__ == "__main__":
    key = jax.random.PRNGKey(0)
    kx, kp = jax.random.split(key)
    B, T = 2, 8
    x = jax.random.normal(kx, (B, T, N_EMBD), jnp.float32)
    mask = jnp.ones((B, T), jnp.float32).at[1, 6:].set(0.0)   # padded tail on batch 1
    params = init_params(kp)

    ref = reference_forward(x, mask, params)

    # f32 operands: exact parity with the f32 reference
    out = jax.block_until_ready(block_forward(x, mask, params))
    assert jnp.allclose(out, ref, atol=1e-4, rtol=1e-4), "f32 mismatch vs JAX reference"

    # bf16 MXU operands (f32 accumulation / residuals): looser tolerance
    out_bf16 = jax.block_until_ready(
        block_forward(x, mask, params, compute_dtype=jnp.bfloat16))
    assert jnp.allclose(out_bf16, ref, atol=5e-2, rtol=5e-2), "bf16 mismatch vs JAX reference"

    print("KERNEL_OK")
</pallas_src>

<mosaic_0001>
module attributes {stable_mosaic.version = 11 : i64} {
  func.func @block_kernel(%arg0: i32, %arg1: memref<2x8x16xf32, #tpu.memory_space<vmem>>, %arg2: memref<2x8xf32, #tpu.memory_space<vmem>>, %arg3: memref<24x128xf32, #tpu.memory_space<vmem>>, %arg4: memref<64x16xf32, #tpu.memory_space<vmem>>, %arg5: memref<2x8x16xf32, #tpu.memory_space<vmem>>) attributes {dimension_semantics = [#tpu.dimension_semantics<parallel>], iteration_bounds = array<i64: 1>, scalar_prefetch = 0 : i64, scratch_operands = 0 : i64, tpu.core_type = #tpu.core_type<tc>, window_params = [{transform_indices = @transform_0, window_bounds = array<i64: 2, 8, 16>}, {transform_indices = @transform_1, window_bounds = array<i64: 2, 8>}, {pipeline_mode = #tpu.pipeline_mode<synchronous>, transform_indices = @transform_2, window_bounds = array<i64: 24, 128>}, {pipeline_mode = #tpu.pipeline_mode<synchronous>, transform_indices = @transform_3, window_bounds = array<i64: 64, 16>}, {transform_indices = @transform_4, window_bounds = array<i64: 2, 8, 16>}]} {
    %c0 = arith.constant 0 : index
    %c0_0 = arith.constant 0 : index
    %c0_1 = arith.constant 0 : index
    %0 = vector.load %arg1[%c0, %c0_0, %c0_1] : memref<2x8x16xf32, #tpu.memory_space<vmem>>, vector<2x8x16xf32>
    %c0_2 = arith.constant 0 : index
    %c0_3 = arith.constant 0 : index
    %1 = vector.load %arg2[%c0_2, %c0_3] : memref<2x8xf32, #tpu.memory_space<vmem>>, vector<2x8xf32>
    %c0_4 = arith.constant 0 : index
    %c0_5 = arith.constant 0 : index
    %2 = vector.load %arg3[%c0_4, %c0_5] : memref<24x128xf32, #tpu.memory_space<vmem>>, vector<24x128xf32>
    %c0_6 = arith.constant 0 : index
    %c0_7 = arith.constant 0 : index
    %3 = vector.load %arg4[%c0_6, %c0_7] : memref<64x16xf32, #tpu.memory_space<vmem>>, vector<64x16xf32>
    %4 = vector.extract_strided_slice %2 {offsets = [0, 0], sizes = [16, 48], strides = [1, 1]} : vector<24x128xf32> to vector<16x48xf32>
    %5 = vector.extract_strided_slice %2 {offsets = [0, 48], sizes = [16, 16], strides = [1, 1]} : vector<24x128xf32> to vector<16x16xf32>
    %6 = vector.extract_strided_slice %2 {offsets = [0, 64], sizes = [16, 64], strides = [1, 1]} : vector<24x128xf32> to vector<16x64xf32>
    %7 = vector.extract_strided_slice %2 {offsets = [16, 0], sizes = [8, 128], strides = [1, 1]} : vector<24x128xf32> to vector<8x128xf32>
    %8 = vector.extract_strided_slice %7 {offsets = [0, 0], sizes = [1, 16], strides = [1, 1]} : vector<8x128xf32> to vector<1x16xf32>
    %9 = vector.extract_strided_slice %7 {offsets = [1, 0], sizes = [1, 16], strides = [1, 1]} : vector<8x128xf32> to vector<1x16xf32>
    %10 = vector.extract_strided_slice %7 {offsets = [2, 0], sizes = [1, 16], strides = [1, 1]} : vector<8x128xf32> to vector<1x16xf32>
    %11 = vector.extract_strided_slice %7 {offsets = [3, 0], sizes = [1, 16], strides = [1, 1]} : vector<8x128xf32> to vector<1x16xf32>
    %12 = vector.extract_strided_slice %7 {offsets = [4, 0], sizes = [1, 16], strides = [1, 1]} : vector<8x128xf32> to vector<1x16xf32>
    %13 = vector.extract_strided_slice %7 {offsets = [5, 0], sizes = [1, 16], strides = [1, 1]} : vector<8x128xf32> to vector<1x16xf32>
    %14 = vector.extract_strided_slice %7 {offsets = [6, 0], sizes = [1, 64], strides = [1, 1]} : vector<8x128xf32> to vector<1x64xf32>
    %15 = vector.shape_cast %0 : vector<2x8x16xf32> to vector<16x16xf32>
    %cst = arith.constant dense<0.000000e+00> : vector<16xf32>
    %16 = vector.multi_reduction <add>, %15, %cst [1] : vector<16x16xf32> to vector<16xf32>
    %17 = vector.shape_cast %16 : vector<16xf32> to vector<16x1xf32>
    %cst_8 = arith.constant 1.600000e+01 : f32
    %18 = vector.broadcast %cst_8 : f32 to vector<16x1xf32>
    %19 = arith.divf %17, %18 : vector<16x1xf32>
    %20 = vector.broadcast %19 : vector<16x1xf32> to vector<16x16xf32>
    %21 = arith.subf %15, %20 : vector<16x16xf32>
    %22 = arith.mulf %21, %21 : vector<16x16xf32>
    %cst_9 = arith.constant dense<0.000000e+00> : vector<16xf32>
    %23 = vector.multi_reduction <add>, %22, %cst_9 [1] : vector<16x16xf32> to vector<16xf32>
    %24 = vector.shape_cast %23 : vector<16xf32> to vector<16x1xf32>
    %cst_10 = arith.constant 1.600000e+01 : f32
    %25 = vector.broadcast %cst_10 : f32 to vector<16x1xf32>
    %26 = arith.divf %24, %25 : vector<16x1xf32>
    %27 = vector.broadcast %19 : vector<16x1xf32> to vector<16x16xf32>
    %28 = arith.subf %15, %27 : vector<16x16xf32>
    %cst_11 = arith.constant 9.99999974E-6 : f32
    %29 = vector.broadcast %cst_11 : f32 to vector<16x1xf32>
    %30 = arith.addf %26, %29 : vector<16x1xf32>
    %31 = math.rsqrt %30 : vector<16x1xf32>
    %32 = vector.broadcast %31 : vector<16x1xf32> to vector<16x16xf32>
    %33 = arith.mulf %28, %32 : vector<16x16xf32>
    %34 = vector.broadcast %8 : vector<1x16xf32> to vector<16x16xf32>
    %35 = arith.mulf %33, %34 : vector<16x16xf32>
    %36 = vector.broadcast %9 : vector<1x16xf32> to vector<16x16xf32>
    %37 = arith.addf %35, %36 : vector<16x16xf32>
    %cst_12 = arith.constant dense<0.000000e+00> : vector<16x48xf32>
    %38 = tpu.matmul %37, %4, %cst_12 {dimension_numbers = #tpu.dot_dimension_numbers<[1], [0], [0], [1], [0, 0, 1, 1], [], []>} : vector<16x16xf32>, vector<16x48xf32>, vector<16x48xf32> -> vector<16x48xf32>
    %39 = vector.shape_cast %38 : vector<16x48xf32> to vector<2x8x48xf32>
    %40 = vector.extract_strided_slice %39 {offsets = [0, 0, 0], sizes = [2, 8, 4], strides = [1, 1, 1]} : vector<2x8x48xf32> to vector<2x8x4xf32>
    %41 = vector.extract_strided_slice %39 {offsets = [0, 0, 4], sizes = [2, 8, 4], strides = [1, 1, 1]} : vector<2x8x48xf32> to vector<2x8x4xf32>
    %42 = vector.extract_strided_slice %39 {offsets = [0, 0, 8], sizes = [2, 8, 4], strides = [1, 1, 1]} : vector<2x8x48xf32> to vector<2x8x4xf32>
    %43 = vector.extract_strided_slice %39 {offsets = [0, 0, 12], sizes = [2, 8, 4], strides = [1, 1, 1]} : vector<2x8x48xf32> to vector<2x8x4xf32>
    %44 = tpu.concatenate %40, %41, %42, %43 in 0 : vector<2x8x4xf32>, vector<2x8x4xf32>, vector<2x8x4xf32>, vector<2x8x4xf32> -> vector<8x8x4xf32>
    %45 = vector.extract_strided_slice %39 {offsets = [0, 0, 16], sizes = [2, 8, 4], strides = [1, 1, 1]} : vector<2x8x48xf32> to vector<2x8x4xf32>
    %46 = vector.extract_strided_slice %39 {offsets = [0, 0, 20], sizes = [2, 8, 4], strides = [1, 1, 1]} : vector<2x8x48xf32> to vector<2x8x4xf32>
    %47 = vector.extract_strided_slice %39 {offsets = [0, 0, 24], sizes = [2, 8, 4], strides = [1, 1, 1]} : vector<2x8x48xf32> to vector<2x8x4xf32>
    %48 = vector.extract_strided_slice %39 {offsets = [0, 0, 28], sizes = [2, 8, 4], strides = [1, 1, 1]} : vector<2x8x48xf32> to vector<2x8x4xf32>
    %49 = tpu.concatenate %45, %46, %47, %48 in 0 : vector<2x8x4xf32>, vector<2x8x4xf32>, vector<2x8x4xf32>, vector<2x8x4xf32> -> vector<8x8x4xf32>
    %50 = vector.extract_strided_slice %39 {offsets = [0, 0, 32], sizes = [2, 8, 4], strides = [1, 1, 1]} : vector<2x8x48xf32> to vector<2x8x4xf32>
    %51 = vector.extract_strided_slice %39 {offsets = [0, 0, 36], sizes = [2, 8, 4], strides = [1, 1, 1]} : vector<2x8x48xf32> to vector<2x8x4xf32>
    %52 = vector.extract_strided_slice %39 {offsets = [0, 0, 40], sizes = [2, 8, 4], strides = [1, 1, 1]} : vector<2x8x48xf32> to vector<2x8x4xf32>
    %53 = vector.extract_strided_slice %39 {offsets = [0, 0, 44], sizes = [2, 8, 4], strides = [1, 1, 1]} : vector<2x8x48xf32> to vector<2x8x4xf32>
    %54 = tpu.concatenate %50, %51, %52, %53 in 0 : vector<2x8x4xf32>, vector<2x8x4xf32>, vector<2x8x4xf32>, vector<2x8x4xf32> -> vector<8x8x4xf32>
    %55 = tpu.concatenate %1, %1, %1, %1 in 0 : vector<2x8xf32>, vector<2x8xf32>, vector<2x8xf32>, vector<2x8xf32> -> vector<8x8xf32>
    %56 = vector.shape_cast %55 : vector<8x8xf32> to vector<8x8x1xf32>
    %cst_13 = arith.constant 5.000000e-01 : f32
    %57 = vector.broadcast %cst_13 : f32 to vector<8x8x1xf32>
    %58 = arith.cmpf ogt, %56, %57 : vector<8x8x1xf32>
    %59 = vector.shape_cast %55 : vector<8x8xf32> to vector<8x1x8xf32>
    %cst_14 = arith.constant 5.000000e-01 : f32
    %60 = vector.broadcast %cst_14 : f32 to vector<8x1x8xf32>
    %61 = arith.cmpf ogt, %59, %60 : vector<8x1x8xf32>
    %62 = vector.broadcast %58 : vector<8x8x1xi1> to vector<8x8x8xi1>
    %63 = vector.broadcast %61 : vector<8x1x8xi1> to vector<8x8x8xi1>
    %64 = arith.andi %62, %63 : vector<8x8x8xi1>
    "tpu.trace_start"() <{level = 10 : i32, message = "bqd,bkd->bqk"}> : () -> ()
    %cst_15 = arith.constant dense<0.000000e+00> : vector<8x8x8xf32>
    %65 = tpu.matmul %44, %49, %cst_15 {dimension_numbers = #tpu.dot_dimension_numbers<[2], [2], [1], [1], [0, 0, 0, 1, 1, 1], [0], [0]>} : vector<8x8x4xf32>, vector<8x8x4xf32>, vector<8x8x8xf32> -> vector<8x8x8xf32>
    "tpu.trace_stop"() : () -> ()
    %cst_16 = arith.constant 5.000000e-01 : f32
    %66 = vector.broadcast %cst_16 : f32 to vector<8x8x8xf32>
    %67 = arith.mulf %65, %66 : vector<8x8x8xf32>
    %cst_17 = arith.constant -1.000000e+09 : f32
    %68 = vector.broadcast %cst_17 : f32 to vector<8x8x8xf32>
    %69 = arith.select %64, %67, %68 : vector<8x8x8xi1>, vector<8x8x8xf32>
    %cst_18 = arith.constant dense<0xFF800000> : vector<8x8xf32>
    %70 = vector.multi_reduction <maximumf>, %69, %cst_18 [2] : vector<8x8x8xf32> to vector<8x8xf32>
    %71 = vector.shape_cast %70 : vector<8x8xf32> to vector<8x8x1xf32>
    %72 = vector.broadcast %71 : vector<8x8x1xf32> to vector<8x8x8xf32>
    %73 = arith.subf %69, %72 : vector<8x8x8xf32>
    %74 = math.exp %73 : vector<8x8x8xf32>
    %cst_19 = arith.constant dense<0.000000e+00> : vector<8x8xf32>
    %75 = vector.multi_reduction <add>, %74, %cst_19 [2] : vector<8x8x8xf32> to vector<8x8xf32>
    %76 = vector.shape_cast %75 : vector<8x8xf32> to vector<8x8x1xf32>
    %77 = vector.broadcast %76 : vector<8x8x1xf32> to vector<8x8x8xf32>
    %78 = arith.divf %74, %77 : vector<8x8x8xf32>
    "tpu.trace_start"() <{level = 10 : i32, message = "bqk,bkd->bqd"}> : () -> ()
    %cst_20 = arith.constant dense<0.000000e+00> : vector<8x8x4xf32>
    %79 = tpu.matmul %78, %54, %cst_20 {dimension_numbers = #tpu.dot_dimension_numbers<[2], [1], [1], [2], [0, 0, 0, 1, 1, 2], [0], [0]>} : vector<8x8x8xf32>, vector<8x8x4xf32>, vector<8x8x4xf32> -> vector<8x8x4xf32>
    "tpu.trace_stop"() : () -> ()
    %80 = vector.extract_strided_slice %79 {offsets = [0, 0, 0], sizes = [2, 8, 4], strides = [1, 1, 1]} : vector<8x8x4xf32> to vector<2x8x4xf32>
    %81 = vector.extract_strided_slice %79 {offsets = [2, 0, 0], sizes = [2, 8, 4], strides = [1, 1, 1]} : vector<8x8x4xf32> to vector<2x8x4xf32>
    %82 = vector.extract_strided_slice %79 {offsets = [4, 0, 0], sizes = [2, 8, 4], strides = [1, 1, 1]} : vector<8x8x4xf32> to vector<2x8x4xf32>
    %83 = vector.extract_strided_slice %79 {offsets = [6, 0, 0], sizes = [2, 8, 4], strides = [1, 1, 1]} : vector<8x8x4xf32> to vector<2x8x4xf32>
    %84 = tpu.concatenate %80, %81, %82, %83 in 2 : vector<2x8x4xf32>, vector<2x8x4xf32>, vector<2x8x4xf32>, vector<2x8x4xf32> -> vector<2x8x16xf32>
    %85 = vector.shape_cast %84 : vector<2x8x16xf32> to vector<16x16xf32>
    %cst_21 = arith.constant dense<0.000000e+00> : vector<16x16xf32>
    %86 = tpu.matmul %85, %5, %cst_21 {dimension_numbers = #tpu.dot_dimension_numbers<[1], [0], [0], [1], [0, 0, 1, 1], [], []>} : vector<16x16xf32>, vector<16x16xf32>, vector<16x16xf32> -> vector<16x16xf32>
    %87 = vector.broadcast %12 : vector<1x16xf32> to vector<16x16xf32>
    %88 = arith.addf %86, %87 : vector<16x16xf32>
    %89 = arith.addf %15, %88 : vector<16x16xf32>
    %cst_22 = arith.constant dense<0.000000e+00> : vector<16xf32>
    %90 = vector.multi_reduction <add>, %89, %cst_22 [1] : vector<16x16xf32> to vector<16xf32>
    %91 = vector.shape_cast %90 : vector<16xf32> to vector<16x1xf32>
    %cst_23 = arith.constant 1.600000e+01 : f32
    %92 = vector.broadcast %cst_23 : f32 to vector<16x1xf32>
    %93 = arith.divf %91, %92 : vector<16x1xf32>
    %94 = vector.broadcast %93 : vector<16x1xf32> to vector<16x16xf32>
    %95 = arith.subf %89, %94 : vector<16x16xf32>
    %96 = arith.mulf %95, %95 : vector<16x16xf32>
    %cst_24 = arith.constant dense<0.000000e+00> : vector<16xf32>
    %97 = vector.multi_reduction <add>, %96, %cst_24 [1] : vector<16x16xf32> to vector<16xf32>
    %98 = vector.shape_cast %97 : vector<16xf32> to vector<16x1xf32>
    %cst_25 = arith.constant 1.600000e+01 : f32
    %99 = vector.broadcast %cst_25 : f32 to vector<16x1xf32>
    %100 = arith.divf %98, %99 : vector<16x1xf32>
    %101 = vector.broadcast %93 : vector<16x1xf32> to vector<16x16xf32>
    %102 = arith.subf %89, %101 : vector<16x16xf32>
    %cst_26 = arith.constant 9.99999974E-6 : f32
    %103 = vector.broadcast %cst_26 : f32 to vector<16x1xf32>
    %104 = arith.addf %100, %103 : vector<16x1xf32>
    %105 = math.rsqrt %104 : vector<16x1xf32>
    %106 = vector.broadcast %105 : vector<16x1xf32> to vector<16x16xf32>
    %107 = arith.mulf %102, %106 : vector<16x16xf32>
    %108 = vector.broadcast %10 : vector<1x16xf32> to vector<16x16xf32>
    %109 = arith.mulf %107, %108 : vector<16x16xf32>
    %110 = vector.broadcast %11 : vector<1x16xf32> to vector<16x16xf32>
    %111 = arith.addf %109, %110 : vector<16x16xf32>
    %cst_27 = arith.constant dense<0.000000e+00> : vector<16x64xf32>
    %112 = tpu.matmul %111, %6, %cst_27 {dimension_numbers = #tpu.dot_dimension_numbers<[1], [0], [0], [1], [0, 0, 1, 1], [], []>} : vector<16x16xf32>, vector<16x64xf32>, vector<16x64xf32> -> vector<16x64xf32>
    %113 = vector.broadcast %14 : vector<1x64xf32> to vector<16x64xf32>
    %114 = arith.addf %112, %113 : vector<16x64xf32>
    %cst_28 = arith.constant 0.000000e+00 : f32
    %115 = vector.broadcast %cst_28 : f32 to vector<16x64xf32>
    %116 = arith.maximumf %114, %115 : vector<16x64xf32>
    %cst_29 = arith.constant dense<0.000000e+00> : vector<16x16xf32>
    %117 = tpu.matmul %116, %3, %cst_29 {dimension_numbers = #tpu.dot_dimension_numbers<[1], [0], [0], [1], [0, 0, 1, 1], [], []>} : vector<16x64xf32>, vector<64x16xf32>, vector<16x16xf32> -> vector<16x16xf32>
    %118 = vector.broadcast %13 : vector<1x16xf32> to vector<16x16xf32>
    %119 = arith.addf %117, %118 : vector<16x16xf32>
    %120 = arith.addf %89, %119 : vector<16x16xf32>
    %121 = vector.shape_cast %120 : vector<16x16xf32> to vector<2x8x16xf32>
    %c0_30 = arith.constant 0 : index
    %c0_31 = arith.constant 0 : index
    %c0_32 = arith.constant 0 : index
    %122 = vector.load %arg5[%c0_30, %c0_31, %c0_32] : memref<2x8x16xf32, #tpu.memory_space<vmem>>, vector<2x8x16xf32>
    tpu.vector_store %arg5[%c0_30, %c0_31, %c0_32], %121 {strides = array<i32>} : memref<2x8x16xf32, #tpu.memory_space<vmem>>, vector<2x8x16xf32>,
    return
  }
  func.func @transform_0(%arg0: i32) -> (i32, i32, i32) {
    %c0_i32 = arith.constant 0 : i32
    %c0_i32_0 = arith.constant 0 : i32
    %c0_i32_1 = arith.constant 0 : i32
    return %arg0, %c0_i32, %c0_i32_0 : i32, i32, i32
  }
  func.func @transform_1(%arg0: i32) -> (i32, i32) {
    %c0_i32 = arith.constant 0 : i32
    %c0_i32_0 = arith.constant 0 : i32
    return %arg0, %c0_i32 : i32, i32
  }
  func.func @transform_2(%arg0: i32) -> (i32, i32) {
    %c0_i32 = arith.constant 0 : i32
    %c0_i32_0 = arith.constant 0 : i32
    %c0_i32_1 = arith.constant 0 : i32
    return %c0_i32, %c0_i32_0 : i32, i32
  }
  func.func @transform_3(%arg0: i32) -> (i32, i32) {
    %c0_i32 = arith.constant 0 : i32
    %c0_i32_0 = arith.constant 0 : i32
    %c0_i32_1 = arith.constant 0 : i32
    return %c0_i32, %c0_i32_0 : i32, i32
  }
  func.func @transform_4(%arg0: i32) -> (i32, i32, i32) {
    %c0_i32 = arith.constant 0 : i32
    %c0_i32_0 = arith.constant 0 : i32
    %c0_i32_1 = arith.constant 0 : i32
    return %arg0, %c0_i32, %c0_i32_0 : i32, i32, i32
  }
}

</mosaic_0001>

<llo_original>
// kernel: tpu_custom_call.1
$region0: #{tpu_custom_call.1}
  #allocation0 [shape = 'u32[]', space=smem, size = 0x4, offset = 0x4, fixed_abs, tag = 'smem constant byte address 0x4 - core index']
  #allocation1 [shape = 'u32[144,128]{1,0:T(1,128)}', space=vmem, size = 0x12000, scoped, tag = 'internal scratch']
  %s0 = inlined_call_operand.vmem [shape: f32[2,8,16], index: 0, kind: input, shape index: {}]
  %s1 = inlined_call_operand.vmem [shape: f32[2,8], index: 1, kind: input, shape index: {}]
  %s2 = inlined_call_operand.vmem [shape: f32[24,128], index: 2, kind: input, shape index: {}]
  %s3 = inlined_call_operand.vmem [shape: f32[64,16], index: 3, kind: input, shape index: {}]
  %s4 = inlined_call_operand.hbm [shape: f32[2,8,16], index: 4, kind: output, shape index: {}]
  %s5 = sld [smem:[#allocation0]]
  $region26: #{tpu_custom_call.1} parent=0
    _
  %s7 = ssub.s32 1, %s5
  %s8 = scalar_select 0, %s7, %s5
  $region1: #{tpu_custom_call.1} parent=0
    #allocation2 [shape = 'u8[8192]{0}', space=vmem, size = 0x2000, scoped, tag = 'output window, operand 0, single buffered']
    #allocation3 [shape = 's32[1]{0}', space=sflag, size = 0x4, scoped, tag = 'scoped memory for tpu_custom_call.1']
    %9 = vsyncpa [#allocation3], 0
    // Predicated region
    $region2: #{tpu_custom_call.1} parent=1 // pred_check
      _
    $region3: #{tpu_custom_call.1} parent=1 // pred_check_branch
      %11 = sbr.rel (0) target = $region5
    $region4: #{tpu_custom_call.1} parent=1 // pred_region
      _
    $region5: #{tpu_custom_call.1} parent=1 // pred_fallthru
      _
    // Predicated region
    $region6: #{tpu_custom_call.1} parent=1 // pred_check
      _
    $region7: #{tpu_custom_call.1} parent=1 // pred_check_branch
      %13 = sbr.rel (0) target = $region9
    $region8: #{tpu_custom_call.1} parent=1 // pred_region
      _
    $region9: #{tpu_custom_call.1} parent=1 // pred_fallthru
      _
    // Predicated region
    $region10: #{tpu_custom_call.1} parent=1 // pred_check
      _
    $region11: #{tpu_custom_call.1} parent=1 // pred_check_branch
      %15 = sbr.rel (0) target = $region13
    $region12: #{tpu_custom_call.1} parent=1 // pred_region
      _
    $region13: #{tpu_custom_call.1} parent=1 // pred_fallthru
      _
    // Predicated region
    $region14: #{tpu_custom_call.1} parent=1 // pred_check
      _
    $region15: #{tpu_custom_call.1} parent=1 // pred_check_branch
      %17 = sbr.rel (0) target = $region17
    $region16: #{tpu_custom_call.1} parent=1 // pred_region
      _
    $region17: #{tpu_custom_call.1} parent=1 // pred_fallthru
      _
    %v18 = vld [vmem:[%s0] sm:$0xff]
    %v19 = vld [vmem:[%s0 + $0x8] sm:$0xff]
    %v20 = vld [vmem:[%s1] sm:$0x3]
    %v21 = vld [vmem:[%s2] sm:$0xff]
    %v22 = vld [vmem:[%s2 + $0x8] sm:$0xff]
    %v23 = vld [vmem:[%s2 + $0x10] sm:$0xff]
    %v24 = vld [vmem:[%s3] sm:$0xff]
    %v25 = vld [vmem:[%s3 + $0x8] sm:$0xff]
    %v26 = vld [vmem:[%s3 + $0x10] sm:$0xff]
    %v27 = vld [vmem:[%s3 + $0x18] sm:$0xff]
    %v28 = vld [vmem:[%s3 + $0x20] sm:$0xff]
    %v29 = vld [vmem:[%s3 + $0x28] sm:$0xff]
    %v30 = vld [vmem:[%s3 + $0x30] sm:$0xff]
    %v31 = vld [vmem:[%s3 + $0x38] sm:$0xff]
    %vm32 = vcmask 130048
    %v33 = vsel %vm32, %v18, 0.0
    %34 = vadd.xlane.f32.xlu0 %v33
    %v35 = vpop.xlane.xlu0 %34
    %v36 = vsel %vm32, %v19, 0.0
    %37 = vadd.xlane.f32.xlu0 %v36
    %v38 = vpop.xlane.xlu0 %37
    %v39 = vrcp.pop 16.0
    %v40 = vmul.f32 %v35, %v39
    %v41 = vmul.f32 %v38, %v39
    %v42 = vsub.f32 %v18, %v40
    %v43 = vsub.f32 %v19, %v41
    %v44 = vmul.f32 %v42, %v42
    %v45 = vmul.f32 %v43, %v43
    %v46 = vsel %vm32, %v44, 0.0
    %47 = vadd.xlane.f32.xlu0 %v46
    %v48 = vpop.xlane.xlu0 %47
    %v49 = vsel %vm32, %v45, 0.0
    %50 = vadd.xlane.f32.xlu0 %v49
    %v51 = vpop.xlane.xlu0 %50
    %v52 = vmul.f32 %v48, %v39
    %v53 = vmul.f32 %v51, %v39
    %v54 = vadd.f32 %v52, 1e-05
    %v55 = vadd.f32 %v53, 1e-05
    %v56 = vrsqrt.pop %v54
    %v57 = vrsqrt.pop %v55
    %v58 = vmul.f32 %v42, %v56
    %v59 = vmul.f32 %v43, %v57
    %v60 = vlaneseq
    %v61 = vshrl.u32 %v60, 7
    %v62 = vsub.s32 0, %v61
    %v63 = vrot.slane %v23, %v62
    %v64 = vmul.f32 %v58, %v63
    %v65 = vmul.f32 %v59, %v63
    %v66 = vlaneseq
    %v67 = vshrl.u32 %v66, 7
    %v68 = vsub.s32 1, %v67
    %v69 = vrot.slane %v23, %v68
    %v70 = vadd.f32 %v64, %v69
    %v71 = vadd.f32 %v65, %v69
    %v73 = vsel %vm32, %v70, 0
    %v76 = vsel %vm32, %v71, 0
    %78 = vmatprep.subr.mxu0 0.0
    %79 = vmatpush1.msra.mxu0 %v21
    %80 = vmatprep.subr.mxu0 0.0
    %81 = vmatpush1.msra.mxu0 %v22
    %82 = vmatprep.subr.mxu0 0.0
    %83 = vmatpush1.msra.mxu0 0.0
    %84 = vmatprep.subr.mxu0 0.0
    %85 = vmatpush1.msra.mxu0 0.0
    %86 = vmatprep.subr.mxu0 0.0
    %87 = vmatpush1.msra.mxu0 0.0
    %88 = vmatprep.subr.mxu0 0.0
    %89 = vmatpush1.msra.mxu0 0.0
    %90 = vmatprep.subr.mxu0 0.0
    %91 = vmatpush1.msra.mxu0 0.0
    %92 = vmatprep.subr.mxu0 0.0
    %93 = vmatpush1.msra.mxu0 0.0
    %94 = vmatprep.subr.mxu0 0.0
    %95 = vmatpush1.msra.mxu0 0.0
    %96 = vmatprep.subr.mxu0 0.0
    %97 = vmatpush1.msra.mxu0 0.0
    %98 = vmatprep.subr.mxu0 0.0
    %99 = vmatpush1.msra.mxu0 0.0
    %100 = vmatprep.subr.mxu0 0.0
    %101 = vmatpush1.msra.mxu0 0.0
    %102 = vmatprep.subr.mxu0 0.0
    %103 = vmatpush1.msra.mxu0 0.0
    %104 = vmatprep.subr.mxu0 0.0
    %105 = vmatpush1.msra.mxu0 0.0
    %106 = vmatprep.subr.mxu0 0.0
    %107 = vmatpush1.msra.mxu0 0.0
    %108 = vmatprep.subr.mxu0 0.0
    %109 = vmatpush1.msra.mxu0 0.0
    %110 = vmatprep.subr.mxu0 0.0
    %111 = vmatpush1.msra.mxu0 0.0
    %112 = vmatprep.subr.mxu0 0.0
    %113 = vmatpush1.msra.mxu0 0.0
    %114 = vmatprep.subr.mxu0 0.0
    %115 = vmatpush1.msra.mxu0 0.0
    %116 = vmatprep.subr.mxu0 0.0
    %117 = vmatpush1.msra.mxu0 0.0
    %118 = vmatprep.subr.mxu0 0.0
    %119 = vmatpush1.msra.mxu0 0.0
    %120 = vmatprep.subr.mxu0 0.0
    %121 = vmatpush1.msra.mxu0 0.0
    %122 = vmatprep.subr.mxu0 0.0
    %123 = vmatpush1.msra.mxu0 0.0
    %124 = vmatprep.subr.mxu0 0.0
    %125 = vmatpush1.msra.mxu0 0.0
    %126 = vmatprep.subr.mxu0 0.0
    %127 = vmatpush1.msra.mxu0 0.0
    %128 = vmatprep.subr.mxu0 0.0
    %129 = vmatpush1.msra.mxu0 0.0
    %130 = vmatprep.subr.mxu0 0.0
    %131 = vmatpush1.msra.mxu0 0.0
    %132 = vmatprep.subr.mxu0 0.0
    %133 = vmatpush1.msra.mxu0 0.0
    %134 = vmatprep.subr.mxu0 0.0
    %135 = vmatpush1.msra.mxu0 0.0
    %136 = vmatprep.subr.mxu0 0.0
    %137 = vmatpush1.msra.mxu0 0.0
    %138 = vmatprep.subr.mxu0 0.0
    %139 = vmatpush1.msra.mxu0 0.0
    %140 = vmatprep.subr.mxu0 0.0
    %141 = vmatpush1.msra.mxu0 0.0
    %142 = vmatprep.mubr.f32.mxu0 0.0
    %143 = vmatmul.mubr.f32.gmra.mrb[0].mxu0 %v73
    %v144 = vpop.f32.mrb[0].mxu0
    %v145 = vadd.f32 0.0, %v144
    %v146 = vpop.f32.mrb[0].mxu0
    %147 = vmatprep.mubr.f32.mxu0 0.0
    %148 = vmatmul.mubr.f32.gmra.mrb[0].mxu0 %v76
    %v149 = vpop.f32.mrb[0].mxu0
    %v150 = vadd.f32 0.0, %v149
    %v151 = vpop.f32.mrb[0].mxu0
    %152 = vdwg.mxu0
    %155 = vrot.lane.b32.xlu0 %v145, 124
    %v156 = vpop.permute.xlu0 %155
    %157 = vrot.lane.b32.xlu0 %v150, 124
    %v158 = vpop.permute.xlu0 %157
    %159 = vrot.lane.b32.xlu0 %v145, 120
    %v160 = vpop.permute.xlu0 %159
    %161 = vrot.lane.b32.xlu0 %v150, 120
    %v162 = vpop.permute.xlu0 %161
    %163 = vrot.lane.b32.xlu0 %v145, 116
    %v164 = vpop.permute.xlu0 %163
    %165 = vrot.lane.b32.xlu0 %v150, 116
    %v166 = vpop.permute.xlu0 %165
    %v168 = vrot.slane %v20, 6
    %v170 = vrot.slane %v20, 4
    %v172 = vrot.slane %v20, 2
    %vm174 = vcmask 1041408
    %v175 = vsel %vm174, %v20, %v168
    %vm176 = vcmask 1043456
    %v177 = vsel %vm176, %v175, %v170
    %vm178 = vcmask 1045504
    %v179 = vsel %vm178, %v177, %v172
    %v180 = vlaneseq
    %v181 = vshrl.u32 %v180, 7
    %v182 = vsub.s32 0, %v181
    %v183 = vrot.slane %v179, %v182
    %185 = vbcast.lane.b32.xlu0 %v183, 256
    %v186 = vpop.permute.xlu0 %185
    %v187 = vlaneseq
    %v188 = vshrl.u32 %v187, 7
    %v189 = vsub.s32 1, %v188
    %v190 = vrot.slane %v179, %v189
    %192 = vbcast.lane.b32.xlu0 %v190, 256
    %v193 = vpop.permute.xlu0 %192
    %v194 = vlaneseq
    %v195 = vshrl.u32 %v194, 7
    %v196 = vsub.s32 2, %v195
    %v197 = vrot.slane %v179, %v196
    %199 = vbcast.lane.b32.xlu0 %v197, 256
    %v200 = vpop.permute.xlu0 %199
    %v201 = vlaneseq
    %v202 = vshrl.u32 %v201, 7
    %v203 = vsub.s32 3, %v202
    %v204 = vrot.slane %v179, %v203
    %206 = vbcast.lane.b32.xlu0 %v204, 256
    %v207 = vpop.permute.xlu0 %206
    %v208 = vlaneseq
    %v209 = vshrl.u32 %v208, 7
    %v210 = vsub.s32 4, %v209
    %v211 = vrot.slane %v179, %v210
    %213 = vbcast.lane.b32.xlu0 %v211, 256
    %v214 = vpop.permute.xlu0 %213
    %v215 = vlaneseq
    %v216 = vshrl.u32 %v215, 7
    %v217 = vsub.s32 5, %v216
    %v218 = vrot.slane %v179, %v217
    %220 = vbcast.lane.b32.xlu0 %v218, 256
    %v221 = vpop.permute.xlu0 %220
    %v222 = vlaneseq
    %v223 = vshrl.u32 %v222, 7
    %v224 = vsub.s32 6, %v223
    %v225 = vrot.slane %v179, %v224
    %227 = vbcast.lane.b32.xlu0 %v225, 256
    %v228 = vpop.permute.xlu0 %227
    %v229 = vlaneseq
    %v230 = vshrl.u32 %v229, 7
    %v231 = vsub.s32 7, %v230
    %v232 = vrot.slane %v179, %v231
    %234 = vbcast.lane.b32.xlu0 %v232, 256
    %v235 = vpop.permute.xlu0 %234
    %vm236 = vcmp.gt.f32.partialorder %v186, 0.5
    %vm237 = vcmp.gt.f32.partialorder %v193, 0.5
    %vm238 = vcmp.gt.f32.partialorder %v200, 0.5
    %vm239 = vcmp.gt.f32.partialorder %v207, 0.5
    %vm240 = vcmp.gt.f32.partialorder %v214, 0.5
    %vm241 = vcmp.gt.f32.partialorder %v221, 0.5
    %vm242 = vcmp.gt.f32.partialorder %v228, 0.5
    %vm243 = vcmp.gt.f32.partialorder %v235, 0.5
    %v245 = vcombine.high %v179, %v179
    %v247 = vunpack.c.l.s4 1966171168
    %v248 = vunpack.c.0.s8 %v247
    %v249 = vlaneseq
    %v250 = vshrl.u32 %v249, 7
    %v251 = vsub.s32 %v248, %v250
    %v252 = vrot.slane %v179, %v251
    %v254 = vunpack.c.l.s4 1966171168
    %v255 = vunpack.c.0.s8 %v254
    %v256 = vlaneseq
    %v257 = vshrl.u32 %v256, 7
    %v258 = vsub.s32 %v255, %v257
    %v259 = vrot.slane %v245, %v258
    %v260 = vcombine.high %v252, %v252
    %v261 = vcombine.high %v259, %v259
    %v263 = vunpack.c.l.s4 1966171168
    %v264 = vunpack.c.0.s8 %v263
    %v265 = vlaneseq
    %v266 = vshrl.u32 %v265, 7
    %v267 = vsub.s32 %v264, %v266
    %v268 = vrot.slane %v252, %v267
    %v270 = vunpack.c.l.s4 1966171168
    %v271 = vunpack.c.0.s8 %v270
    %v272 = vlaneseq
    %v273 = vshrl.u32 %v272, 7
    %v274 = vsub.s32 %v271, %v273
    %v275 = vrot.slane %v259, %v274
    %v277 = vunpack.c.l.s4 1966171168
    %v278 = vunpack.c.0.s8 %v277
    %v279 = vlaneseq
    %v280 = vshrl.u32 %v279, 7
    %v281 = vsub.s32 %v278, %v280
    %v282 = vrot.slane %v260, %v281
    %v284 = vunpack.c.l.s4 1966171168
    %v285 = vunpack.c.0.s8 %v284
    %v286 = vlaneseq
    %v287 = vshrl.u32 %v286, 7
    %v288 = vsub.s32 %v285, %v287
    %v289 = vrot.slane %v261, %v288
    %v290 = vcombine.high %v268, %v268
    %v291 = vcombine.high %v275, %v275
    %v292 = vcombine.high %v282, %v282
    %v293 = vcombine.high %v289, %v289
    %vm302 = vcmp.gt.f32.partialorder %v268, 0.5
    %vm303 = vcmp.gt.f32.partialorder %v282, 0.5
    %vm304 = vcmp.gt.f32.partialorder %v290, 0.5
    %vm305 = vcmp.gt.f32.partialorder %v292, 0.5
    %vm306 = vcmp.gt.f32.partialorder %v275, 0.5
    %vm307 = vcmp.gt.f32.partialorder %v289, 0.5
    %vm308 = vcmp.gt.f32.partialorder %v291, 0.5
    %vm309 = vcmp.gt.f32.partialorder %v293, 0.5
    %v310 = vsel %vm236, 1, 0
    %v311 = vsel %vm237, 1, 0
    %v312 = vsel %vm238, 1, 0
    %v313 = vsel %vm239, 1, 0
    %v314 = vsel %vm240, 1, 0
    %v315 = vsel %vm241, 1, 0
    %v316 = vsel %vm242, 1, 0
    %v317 = vsel %vm243, 1, 0
    %vm318 = vcmp.eq.s32.totalorder %v310, 1
    %vm319 = vcmp.eq.s32.totalorder %v311, 1
    %vm320 = vcmp.eq.s32.totalorder %v312, 1
    %vm321 = vcmp.eq.s32.totalorder %v313, 1
    %vm322 = vcmp.eq.s32.totalorder %v314, 1
    %vm323 = vcmp.eq.s32.totalorder %v315, 1
    %vm324 = vcmp.eq.s32.totalorder %v316, 1
    %vm325 = vcmp.eq.s32.totalorder %v317, 1
    %v326 = vsel %vm302, 1, 0
    %v327 = vsel %vm303, 1, 0
    %v328 = vsel %vm304, 1, 0
    %v329 = vsel %vm305, 1, 0
    %v330 = vsel %vm306, 1, 0
    %v331 = vsel %vm307, 1, 0
    %v332 = vsel %vm308, 1, 0
    %v333 = vsel %vm309, 1, 0
    %v334 = vlaneseq
    %v335 = vshrl.u32 %v334, 7
    %v336 = vsub.s32 0, %v335
    %v337 = vrot.slane %v326, %v336
    %v338 = vlaneseq
    %v339 = vshrl.u32 %v338, 7
    %v340 = vsub.s32 0, %v339
    %v341 = vrot.slane %v327, %v340
    %v342 = vlaneseq
    %v343 = vshrl.u32 %v342, 7
    %v344 = vsub.s32 0, %v343
    %v345 = vrot.slane %v328, %v344
    %v346 = vlaneseq
    %v347 = vshrl.u32 %v346, 7
    %v348 = vsub.s32 0, %v347
    %v349 = vrot.slane %v329, %v348
    %v350 = vlaneseq
    %v351 = vshrl.u32 %v350, 7
    %v352 = vsub.s32 0, %v351
    %v353 = vrot.slane %v330, %v352
    %v354 = vlaneseq
    %v355 = vshrl.u32 %v354, 7
    %v356 = vsub.s32 0, %v355
    %v357 = vrot.slane %v331, %v356
    %v358 = vlaneseq
    %v359 = vshrl.u32 %v358, 7
    %v360 = vsub.s32 0, %v359
    %v361 = vrot.slane %v332, %v360
    %v362 = vlaneseq
    %v363 = vshrl.u32 %v362, 7
    %v364 = vsub.s32 0, %v363
    %v365 = vrot.slane %v333, %v364
    %vm366 = vcmp.eq.s32.totalorder %v337, 1
    %vm367 = vcmp.eq.s32.totalorder %v341, 1
    %vm368 = vcmp.eq.s32.totalorder %v345, 1
    %vm369 = vcmp.eq.s32.totalorder %v349, 1
    %vm370 = vcmp.eq.s32.totalorder %v353, 1
    %vm371 = vcmp.eq.s32.totalorder %v357, 1
    %vm372 = vcmp.eq.s32.totalorder %v361, 1
    %vm373 = vcmp.eq.s32.totalorder %v365, 1
    %vm374 = vmand %vm318, %vm366
    %vm375 = vmand %vm319, %vm367
    %vm376 = vmand %vm320, %vm368
    %vm377 = vmand %vm321, %vm369
    %vm378 = vmand %vm322, %vm370
    %vm379 = vmand %vm323, %vm371
    %vm380 = vmand %vm324, %vm372
    %vm381 = vmand %vm325, %vm373
    %382 = vrot.lane.b32.xlu0 %v145, 112
    %v383 = vpop.permute.xlu0 %382
    %vm384 = vcmask 31744
    %v385 = vsel %vm384, %v145, 0
    %v387 = vsel %vm384, %v383, 0
    %389 = vmatprep.subr.mxu0 0.0
    %390 = vmatpush1.xpose.msra.mxu0 %v387
    %391 = vmatprep.subr.mxu0 0.0
    %392 = vmatpush1.xpose.msra.mxu0 0.0
    %393 = vmatprep.subr.mxu0 0.0
    %394 = vmatpush1.xpose.msra.mxu0 0.0
    %395 = vmatprep.subr.mxu0 0.0
    %396 = vmatpush1.xpose.msra.mxu0 0.0
    %397 = vmatprep.subr.mxu0 0.0
    %398 = vmatpush1.xpose.msra.mxu0 0.0
    %399 = vmatprep.subr.mxu0 0.0
    %400 = vmatpush1.xpose.msra.mxu0 0.0
    %401 = vmatprep.subr.mxu0 0.0
    %402 = vmatpush1.xpose.msra.mxu0 0.0
    %403 = vmatprep.subr.mxu0 0.0
    %404 = vmatpush1.xpose.msra.mxu0 0.0
    %405 = vmatprep.subr.mxu0 0.0
    %406 = vmatpush1.xpose.msra.mxu0 0.0
    %407 = vmatprep.subr.mxu0 0.0
    %408 = vmatpush1.xpose.msra.mxu0 0.0
    %409 = vmatprep.subr.mxu0 0.0
    %410 = vmatpush1.xpose.msra.mxu0 0.0
    %411 = vmatprep.subr.mxu0 0.0
    %412 = vmatpush1.xpose.msra.mxu0 0.0
    %413 = vmatprep.subr.mxu0 0.0
    %414 = vmatpush1.xpose.msra.mxu0 0.0
    %415 = vmatprep.subr.mxu0 0.0
    %416 = vmatpush1.xpose.msra.mxu0 0.0
    %417 = vmatprep.subr.mxu0 0.0
    %418 = vmatpush1.xpose.msra.mxu0 0.0
    %419 = vmatprep.subr.mxu0 0.0
    %420 = vmatpush1.xpose.msra.mxu0 0.0
    %421 = vmatprep.subr.mxu0 0.0
    %422 = vmatpush1.xpose.msra.mxu0 0.0
    %423 = vmatprep.subr.mxu0 0.0
    %424 = vmatpush1.xpose.msra.mxu0 0.0
    %425 = vmatprep.subr.mxu0 0.0
    %426 = vmatpush1.xpose.msra.mxu0 0.0
    %427 = vmatprep.subr.mxu0 0.0
    %428 = vmatpush1.xpose.msra.mxu0 0.0
    %429 = vmatprep.subr.mxu0 0.0
    %430 = vmatpush1.xpose.msra.mxu0 0.0
    %431 = vmatprep.subr.mxu0 0.0
    %432 = vmatpush1.xpose.msra.mxu0 0.0
    %433 = vmatprep.subr.mxu0 0.0
    %434 = vmatpush1.xpose.msra.mxu0 0.0
    %435 = vmatprep.subr.mxu0 0.0
    %436 = vmatpush1.xpose.msra.mxu0 0.0
    %437 = vmatprep.subr.mxu0 0.0
    %438 = vmatpush1.xpose.msra.mxu0 0.0
    %439 = vmatprep.subr.mxu0 0.0
    %440 = vmatpush1.xpose.msra.mxu0 0.0
    %441 = vmatprep.subr.mxu0 0.0
    %442 = vmatpush1.xpose.msra.mxu0 0.0
    %443 = vmatprep.subr.mxu0 0.0
    %444 = vmatpush1.xpose.msra.mxu0 0.0
    %445 = vmatprep.subr.mxu0 0.0
    %446 = vmatpush1.xpose.msra.mxu0 0.0
    %447 = vmatprep.subr.mxu0 0.0
    %448 = vmatpush1.xpose.msra.mxu0 0.0
    %449 = vmatprep.subr.mxu0 0.0
    %450 = vmatpush1.xpose.msra.mxu0 0.0
    %451 = vmatprep.subr.mxu0 0.0
    %452 = vmatpush1.xpose.msra.mxu0 0.0
    %453 = vmatprep.mubr.f32.mxu0 0.0
    %454 = vmatmul.mubr.f32.gmra.mrb[0].mxu0 %v385
    %v455 = vpop.f32.mrb[0].mxu0
    %v456 = vadd.f32 0.0, %v455
    %v457 = vpop.f32.mrb[0].mxu0
    %458 = vdwg.mxu0
    %459 = vrot.lane.b32.xlu0 %v150, 112
    %v460 = vpop.permute.xlu0 %459
    %v461 = vsel %vm384, %v150, 0
    %v463 = vsel %vm384, %v460, 0
    %465 = vmatprep.subr.mxu0 0.0
    %466 = vmatpush1.xpose.msra.mxu0 %v463
    %467 = vmatprep.subr.mxu0 0.0
    %468 = vmatpush1.xpose.msra.mxu0 0.0
    %469 = vmatprep.subr.mxu0 0.0
    %470 = vmatpush1.xpose.msra.mxu0 0.0
    %471 = vmatprep.subr.mxu0 0.0
    %472 = vmatpush1.xpose.msra.mxu0 0.0
    %473 = vmatprep.subr.mxu0 0.0
    %474 = vmatpush1.xpose.msra.mxu0 0.0
    %475 = vmatprep.subr.mxu0 0.0
    %476 = vmatpush1.xpose.msra.mxu0 0.0
    %477 = vmatprep.subr.mxu0 0.0
    %478 = vmatpush1.xpose.msra.mxu0 0.0
    %479 = vmatprep.subr.mxu0 0.0
    %480 = vmatpush1.xpose.msra.mxu0 0.0
    %481 = vmatprep.subr.mxu0 0.0
    %482 = vmatpush1.xpose.msra.mxu0 0.0
    %483 = vmatprep.subr.mxu0 0.0
    %484 = vmatpush1.xpose.msra.mxu0 0.0
    %485 = vmatprep.subr.mxu0 0.0
    %486 = vmatpush1.xpose.msra.mxu0 0.0
    %487 = vmatprep.subr.mxu0 0.0
    %488 = vmatpush1.xpose.msra.mxu0 0.0
    %489 = vmatprep.subr.mxu0 0.0
    %490 = vmatpush1.xpose.msra.mxu0 0.0
    %491 = vmatprep.subr.mxu0 0.0
    %492 = vmatpush1.xpose.msra.mxu0 0.0
    %493 = vmatprep.subr.mxu0 0.0
    %494 = vmatpush1.xpose.msra.mxu0 0.0
    %495 = vmatprep.subr.mxu0 0.0
    %496 = vmatpush1.xpose.msra.mxu0 0.0
    %497 = vmatprep.subr.mxu0 0.0
    %498 = vmatpush1.xpose.msra.mxu0 0.0
    %499 = vmatprep.subr.mxu0 0.0
    %500 = vmatpush1.xpose.msra.mxu0 0.0
    %501 = vmatprep.subr.mxu0 0.0
    %502 = vmatpush1.xpose.msra.mxu0 0.0
    %503 = vmatprep.subr.mxu0 0.0
    %504 = vmatpush1.xpose.msra.mxu0 0.0
    %505 = vmatprep.subr.mxu0 0.0
    %506 = vmatpush1.xpose.msra.mxu0 0.0
    %507 = vmatprep.subr.mxu0 0.0
    %508 = vmatpush1.xpose.msra.mxu0 0.0
    %509 = vmatprep.subr.mxu0 0.0
    %510 = vmatpush1.xpose.msra.mxu0 0.0
    %511 = vmatprep.subr.mxu0 0.0
    %512 = vmatpush1.xpose.msra.mxu0 0.0
    %513 = vmatprep.subr.mxu0 0.0
    %514 = vmatpush1.xpose.msra.mxu0 0.0
    %515 = vmatprep.subr.mxu0 0.0
    %516 = vmatpush1.xpose.msra.mxu0 0.0
    %517 = vmatprep.subr.mxu0 0.0
    %518 = vmatpush1.xpose.msra.mxu0 0.0
    %519 = vmatprep.subr.mxu0 0.0
    %520 = vmatpush1.xpose.msra.mxu0 0.0
    %521 = vmatprep.subr.mxu0 0.0
    %522 = vmatpush1.xpose.msra.mxu0 0.0
    %523 = vmatprep.subr.mxu0 0.0
    %524 = vmatpush1.xpose.msra.mxu0 0.0
    %525 = vmatprep.subr.mxu0 0.0
    %526 = vmatpush1.xpose.msra.mxu0 0.0
    %527 = vmatprep.subr.mxu0 0.0
    %528 = vmatpush1.xpose.msra.mxu0 0.0
    %529 = vmatprep.mubr.f32.mxu0 0.0
    %530 = vmatmul.mubr.f32.gmra.mrb[0].mxu0 %v461
    %v531 = vpop.f32.mrb[0].mxu0
    %v532 = vadd.f32 0.0, %v531
    %v533 = vpop.f32.mrb[0].mxu0
    %534 = vdwg.mxu0
    %535 = vrot.lane.b32.xlu0 %v156, 112
    %v536 = vpop.permute.xlu0 %535
    %v537 = vsel %vm384, %v156, 0
    %v539 = vsel %vm384, %v536, 0
    %541 = vmatprep.subr.mxu0 0.0
    %542 = vmatpush1.xpose.msra.mxu0 %v539
    %543 = vmatprep.subr.mxu0 0.0
    %544 = vmatpush1.xpose.msra.mxu0 0.0
    %545 = vmatprep.subr.mxu0 0.0
    %546 = vmatpush1.xpose.msra.mxu0 0.0
    %547 = vmatprep.subr.mxu0 0.0
    %548 = vmatpush1.xpose.msra.mxu0 0.0
    %549 = vmatprep.subr.mxu0 0.0
    %550 = vmatpush1.xpose.msra.mxu0 0.0
    %551 = vmatprep.subr.mxu0 0.0
    %552 = vmatpush1.xpose.msra.mxu0 0.0
    %553 = vmatprep.subr.mxu0 0.0
    %554 = vmatpush1.xpose.msra.mxu0 0.0
    %555 = vmatprep.subr.mxu0 0.0
    %556 = vmatpush1.xpose.msra.mxu0 0.0
    %557 = vmatprep.subr.mxu0 0.0
    %558 = vmatpush1.xpose.msra.mxu0 0.0
    %559 = vmatprep.subr.mxu0 0.0
    %560 = vmatpush1.xpose.msra.mxu0 0.0
    %561 = vmatprep.subr.mxu0 0.0
    %562 = vmatpush1.xpose.msra.mxu0 0.0
    %563 = vmatprep.subr.mxu0 0.0
    %564 = vmatpush1.xpose.msra.mxu0 0.0
    %565 = vmatprep.subr.mxu0 0.0
    %566 = vmatpush1.xpose.msra.mxu0 0.0
    %567 = vmatprep.subr.mxu0 0.0
    %568 = vmatpush1.xpose.msra.mxu0 0.0
    %569 = vmatprep.subr.mxu0 0.0
    %570 = vmatpush1.xpose.msra.mxu0 0.0
    %571 = vmatprep.subr.mxu0 0.0
    %572 = vmatpush1.xpose.msra.mxu0 0.0
    %573 = vmatprep.subr.mxu0 0.0
    %574 = vmatpush1.xpose.msra.mxu0 0.0
    %575 = vmatprep.subr.mxu0 0.0
    %576 = vmatpush1.xpose.msra.mxu0 0.0
    %577 = vmatprep.subr.mxu0 0.0
    %578 = vmatpush1.xpose.msra.mxu0 0.0
    %579 = vmatprep.subr.mxu0 0.0
    %580 = vmatpush1.xpose.msra.mxu0 0.0
    %581 = vmatprep.subr.mxu0 0.0
    %582 = vmatpush1.xpose.msra.mxu0 0.0
    %583 = vmatprep.subr.mxu0 0.0
    %584 = vmatpush1.xpose.msra.mxu0 0.0
    %585 = vmatprep.subr.mxu0 0.0
    %586 = vmatpush1.xpose.msra.mxu0 0.0
    %587 = vmatprep.subr.mxu0 0.0
    %588 = vmatpush1.xpose.msra.mxu0 0.0
    %589 = vmatprep.subr.mxu0 0.0
    %590 = vmatpush1.xpose.msra.mxu0 0.0
    %591 = vmatprep.subr.mxu0 0.0
    %592 = vmatpush1.xpose.msra.mxu0 0.0
    %593 = vmatprep.subr.mxu0 0.0
    %594 = vmatpush1.xpose.msra.mxu0 0.0
    %595 = vmatprep.subr.mxu0 0.0
    %596 = vmatpush1.xpose.msra.mxu0 0.0
    %597 = vmatprep.subr.mxu0 0.0
    %598 = vmatpush1.xpose.msra.mxu0 0.0
    %599 = vmatprep.subr.mxu0 0.0
    %600 = vmatpush1.xpose.msra.mxu0 0.0
    %601 = vmatprep.subr.mxu0 0.0
    %602 = vmatpush1.xpose.msra.mxu0 0.0
    %603 = vmatprep.subr.mxu0 0.0
    %604 = vmatpush1.xpose.msra.mxu0 0.0
    %605 = vmatprep.mubr.f32.mxu0 0.0
    %606 = vmatmul.mubr.f32.gmra.mrb[0].mxu0 %v537
    %v607 = vpop.f32.mrb[0].mxu0
    %v608 = vadd.f32 0.0, %v607
    %v609 = vpop.f32.mrb[0].mxu0
    %610 = vdwg.mxu0
    %611 = vrot.lane.b32.xlu0 %v158, 112
    %v612 = vpop.permute.xlu0 %611
    %v613 = vsel %vm384, %v158, 0
    %v615 = vsel %vm384, %v612, 0
    %617 = vmatprep.subr.mxu0 0.0
    %618 = vmatpush1.xpose.msra.mxu0 %v615
    %619 = vmatprep.subr.mxu0 0.0
    %620 = vmatpush1.xpose.msra.mxu0 0.0
    %621 = vmatprep.subr.mxu0 0.0
    %622 = vmatpush1.xpose.msra.mxu0 0.0
    %623 = vmatprep.subr.mxu0 0.0
    %624 = vmatpush1.xpose.msra.mxu0 0.0
    %625 = vmatprep.subr.mxu0 0.0
    %626 = vmatpush1.xpose.msra.mxu0 0.0
    %627 = vmatprep.subr.mxu0 0.0
    %628 = vmatpush1.xpose.msra.mxu0 0.0
    %629 = vmatprep.subr.mxu0 0.0
    %630 = vmatpush1.xpose.msra.mxu0 0.0
    %631 = vmatprep.subr.mxu0 0.0
    %632 = vmatpush1.xpose.msra.mxu0 0.0
    %633 = vmatprep.subr.mxu0 0.0
    %634 = vmatpush1.xpose.msra.mxu0 0.0
    %635 = vmatprep.subr.mxu0 0.0
    %636 = vmatpush1.xpose.msra.mxu0 0.0
    %637 = vmatprep.subr.mxu0 0.0
    %638 = vmatpush1.xpose.msra.mxu0 0.0
    %639 = vmatprep.subr.mxu0 0.0
    %640 = vmatpush1.xpose.msra.mxu0 0.0
    %641 = vmatprep.subr.mxu0 0.0
    %642 = vmatpush1.xpose.msra.mxu0 0.0
    %643 = vmatprep.subr.mxu0 0.0
    %644 = vmatpush1.xpose.msra.mxu0 0.0
    %645 = vmatprep.subr.mxu0 0.0
    %646 = vmatpush1.xpose.msra.mxu0 0.0
    %647 = vmatprep.subr.mxu0 0.0
    %648 = vmatpush1.xpose.msra.mxu0 0.0
    %649 = vmatprep.subr.mxu0 0.0
    %650 = vmatpush1.xpose.msra.mxu0 0.0
    %651 = vmatprep.subr.mxu0 0.0
    %652 = vmatpush1.xpose.msra.mxu0 0.0
    %653 = vmatprep.subr.mxu0 0.0
    %654 = vmatpush1.xpose.msra.mxu0 0.0
    %655 = vmatprep.subr.mxu0 0.0
    %656 = vmatpush1.xpose.msra.mxu0 0.0
    %657 = vmatprep.subr.mxu0 0.0
    %658 = vmatpush1.xpose.msra.mxu0 0.0
    %659 = vmatprep.subr.mxu0 0.0
    %660 = vmatpush1.xpose.msra.mxu0 0.0
    %661 = vmatprep.subr.mxu0 0.0
    %662 = vmatpush1.xpose.msra.mxu0 0.0
    %663 = vmatprep.subr.mxu0 0.0
    %664 = vmatpush1.xpose.msra.mxu0 0.0
    %665 = vmatprep.subr.mxu0 0.0
    %666 = vmatpush1.xpose.msra.mxu0 0.0
    %667 = vmatprep.subr.mxu0 0.0
    %668 = vmatpush1.xpose.msra.mxu0 0.0
    %669 = vmatprep.subr.mxu0 0.0
    %670 = vmatpush1.xpose.msra.mxu0 0.0
    %671 = vmatprep.subr.mxu0 0.0
    %672 = vmatpush1.xpose.msra.mxu0 0.0
    %673 = vmatprep.subr.mxu0 0.0
    %674 = vmatpush1.xpose.msra.mxu0 0.0
    %675 = vmatprep.subr.mxu0 0.0
    %676 = vmatpush1.xpose.msra.mxu0 0.0
    %677 = vmatprep.subr.mxu0 0.0
    %678 = vmatpush1.xpose.msra.mxu0 0.0
    %679 = vmatprep.subr.mxu0 0.0
    %680 = vmatpush1.xpose.msra.mxu0 0.0
    %681 = vmatprep.mubr.f32.mxu0 0.0
    %682 = vmatmul.mubr.f32.gmra.mrb[0].mxu0 %v613
    %v683 = vpop.f32.mrb[0].mxu0
    %v684 = vadd.f32 0.0, %v683
    %v685 = vpop.f32.mrb[0].mxu0
    %686 = vdwg.mxu0
    %687 = vrot.lane.b32.xlu0 %v160, 112
    %v688 = vpop.permute.xlu0 %687
    %v689 = vsel %vm384, %v160, 0
    %v691 = vsel %vm384, %v688, 0
    %693 = vmatprep.subr.mxu0 0.0
    %694 = vmatpush1.xpose.msra.mxu0 %v691
    %695 = vmatprep.subr.mxu0 0.0
    %696 = vmatpush1.xpose.msra.mxu0 0.0
    %697 = vmatprep.subr.mxu0 0.0
    %698 = vmatpush1.xpose.msra.mxu0 0.0
    %699 = vmatprep.subr.mxu0 0.0
    %700 = vmatpush1.xpose.msra.mxu0 0.0
    %701 = vmatprep.subr.mxu0 0.0
    %702 = vmatpush1.xpose.msra.mxu0 0.0
    %703 = vmatprep.subr.mxu0 0.0
    %704 = vmatpush1.xpose.msra.mxu0 0.0
    %705 = vmatprep.subr.mxu0 0.0
    %706 = vmatpush1.xpose.msra.mxu0 0.0
    %707 = vmatprep.subr.mxu0 0.0
    %708 = vmatpush1.xpose.msra.mxu0 0.0
    %709 = vmatprep.subr.mxu0 0.0
    %710 = vmatpush1.xpose.msra.mxu0 0.0
    %711 = vmatprep.subr.mxu0 0.0
    %712 = vmatpush1.xpose.msra.mxu0 0.0
    %713 = vmatprep.subr.mxu0 0.0
    %714 = vmatpush1.xpose.msra.mxu0 0.0
    %715 = vmatprep.subr.mxu0 0.0
    %716 = vmatpush1.xpose.msra.mxu0 0.0
    %717 = vmatprep.subr.mxu0 0.0
    %718 = vmatpush1.xpose.msra.mxu0 0.0
    %719 = vmatprep.subr.mxu0 0.0
    %720 = vmatpush1.xpose.msra.mxu0 0.0
    %721 = vmatprep.subr.mxu0 0.0
    %722 = vmatpush1.xpose.msra.mxu0 0.0
    %723 = vmatprep.subr.mxu0 0.0
    %724 = vmatpush1.xpose.msra.mxu0 0.0
    %725 = vmatprep.subr.mxu0 0.0
    %726 = vmatpush1.xpose.msra.mxu0 0.0
    %727 = vmatprep.subr.mxu0 0.0
    %728 = vmatpush1.xpose.msra.mxu0 0.0
    %729 = vmatprep.subr.mxu0 0.0
    %730 = vmatpush1.xpose.msra.mxu0 0.0
    %731 = vmatprep.subr.mxu0 0.0
    %732 = vmatpush1.xpose.msra.mxu0 0.0
    %733 = vmatprep.subr.mxu0 0.0
    %734 = vmatpush1.xpose.msra.mxu0 0.0
    %735 = vmatprep.subr.mxu0 0.0
    %736 = vmatpush1.xpose.msra.mxu0 0.0
    %737 = vmatprep.subr.mxu0 0.0
    %738 = vmatpush1.xpose.msra.mxu0 0.0
    %739 = vmatprep.subr.mxu0 0.0
    %740 = vmatpush1.xpose.msra.mxu0 0.0
    %741 = vmatprep.subr.mxu0 0.0
    %742 = vmatpush1.xpose.msra.mxu0 0.0
    %743 = vmatprep.subr.mxu0 0.0
    %744 = vmatpush1.xpose.msra.mxu0 0.0
    %745 = vmatprep.subr.mxu0 0.0
    %746 = vmatpush1.xpose.msra.mxu0 0.0
    %747 = vmatprep.subr.mxu0 0.0
    %748 = vmatpush1.xpose.msra.mxu0 0.0
    %749 = vmatprep.subr.mxu0 0.0
    %750 = vmatpush1.xpose.msra.mxu0 0.0
    %751 = vmatprep.subr.mxu0 0.0
    %752 = vmatpush1.xpose.msra.mxu0 0.0
    %753 = vmatprep.subr.mxu0 0.0
    %754 = vmatpush1.xpose.msra.mxu0 0.0
    %755 = vmatprep.subr.mxu0 0.0
    %756 = vmatpush1.xpose.msra.mxu0 0.0
    %757 = vmatprep.mubr.f32.mxu0 0.0
    %758 = vmatmul.mubr.f32.gmra.mrb[0].mxu0 %v689
    %v759 = vpop.f32.mrb[0].mxu0
    %v760 = vadd.f32 0.0, %v759
    %v761 = vpop.f32.mrb[0].mxu0
    %762 = vdwg.mxu0
    %763 = vrot.lane.b32.xlu0 %v162, 112
    %v764 = vpop.permute.xlu0 %763
    %v765 = vsel %vm384, %v162, 0
    %v767 = vsel %vm384, %v764, 0
    %769 = vmatprep.subr.mxu0 0.0
    %770 = vmatpush1.xpose.msra.mxu0 %v767
    %771 = vmatprep.subr.mxu0 0.0
    %772 = vmatpush1.xpose.msra.mxu0 0.0
    %773 = vmatprep.subr.mxu0 0.0
    %774 = vmatpush1.xpose.msra.mxu0 0.0
    %775 = vmatprep.subr.mxu0 0.0
    %776 = vmatpush1.xpose.msra.mxu0 0.0
    %777 = vmatprep.subr.mxu0 0.0
    %778 = vmatpush1.xpose.msra.mxu0 0.0
    %779 = vmatprep.subr.mxu0 0.0
    %780 = vmatpush1.xpose.msra.mxu0 0.0
    %781 = vmatprep.subr.mxu0 0.0
    %782 = vmatpush1.xpose.msra.mxu0 0.0
    %783 = vmatprep.subr.mxu0 0.0
    %784 = vmatpush1.xpose.msra.mxu0 0.0
    %785 = vmatprep.subr.mxu0 0.0
    %786 = vmatpush1.xpose.msra.mxu0 0.0
    %787 = vmatprep.subr.mxu0 0.0
    %788 = vmatpush1.xpose.msra.mxu0 0.0
    %789 = vmatprep.subr.mxu0 0.0
    %790 = vmatpush1.xpose.msra.mxu0 0.0
    %791 = vmatprep.subr.mxu0 0.0
    %792 = vmatpush1.xpose.msra.mxu0 0.0
    %793 = vmatprep.subr.mxu0 0.0
    %794 = vmatpush1.xpose.msra.mxu0 0.0
    %795 = vmatprep.subr.mxu0 0.0
    %796 = vmatpush1.xpose.msra.mxu0 0.0
    %797 = vmatprep.subr.mxu0 0.0
    %798 = vmatpush1.xpose.msra.mxu0 0.0
    %799 = vmatprep.subr.mxu0 0.0
    %800 = vmatpush1.xpose.msra.mxu0 0.0
    %801 = vmatprep.subr.mxu0 0.0
    %802 = vmatpush1.xpose.msra.mxu0 0.0
    %803 = vmatprep.subr.mxu0 0.0
    %804 = vmatpush1.xpose.msra.mxu0 0.0
    %805 = vmatprep.subr.mxu0 0.0
    %806 = vmatpush1.xpose.msra.mxu0 0.0
    %807 = vmatprep.subr.mxu0 0.0
    %808 = vmatpush1.xpose.msra.mxu0 0.0
    %809 = vmatprep.subr.mxu0 0.0
    %810 = vmatpush1.xpose.msra.mxu0 0.0
    %811 = vmatprep.subr.mxu0 0.0
    %812 = vmatpush1.xpose.msra.mxu0 0.0
    %813 = vmatprep.subr.mxu0 0.0
    %814 = vmatpush1.xpose.msra.mxu0 0.0
    %815 = vmatprep.subr.mxu0 0.0
    %816 = vmatpush1.xpose.msra.mxu0 0.0
    %817 = vmatprep.subr.mxu0 0.0
    %818 = vmatpush1.xpose.msra.mxu0 0.0
    %819 = vmatprep.subr.mxu0 0.0
    %820 = vmatpush1.xpose.msra.mxu0 0.0
    %821 = vmatprep.subr.mxu0 0.0
    %822 = vmatpush1.xpose.msra.mxu0 0.0
    %823 = vmatprep.subr.mxu0 0.0
    %824 = vmatpush1.xpose.msra.mxu0 0.0
    %825 = vmatprep.subr.mxu0 0.0
    %826 = vmatpush1.xpose.msra.mxu0 0.0
    %827 = vmatprep.subr.mxu0 0.0
    %828 = vmatpush1.xpose.msra.mxu0 0.0
    %829 = vmatprep.subr.mxu0 0.0
    %830 = vmatpush1.xpose.msra.mxu0 0.0
    %831 = vmatprep.subr.mxu0 0.0
    %832 = vmatpush1.xpose.msra.mxu0 0.0
    %833 = vmatprep.mubr.f32.mxu0 0.0
    %834 = vmatmul.mubr.f32.gmra.mrb[0].mxu0 %v765
    %v835 = vpop.f32.mrb[0].mxu0
    %v836 = vadd.f32 0.0, %v835
    %v837 = vpop.f32.mrb[0].mxu0
    %838 = vdwg.mxu0
    %839 = vrot.lane.b32.xlu0 %v164, 112
    %v840 = vpop.permute.xlu0 %839
    %v841 = vsel %vm384, %v164, 0
    %v843 = vsel %vm384, %v840, 0
    %845 = vmatprep.subr.mxu0 0.0
    %846 = vmatpush1.xpose.msra.mxu0 %v843
    %847 = vmatprep.subr.mxu0 0.0
    %848 = vmatpush1.xpose.msra.mxu0 0.0
    %849 = vmatprep.subr.mxu0 0.0
    %850 = vmatpush1.xpose.msra.mxu0 0.0
    %851 = vmatprep.subr.mxu0 0.0
    %852 = vmatpush1.xpose.msra.mxu0 0.0
    %853 = vmatprep.subr.mxu0 0.0
    %854 = vmatpush1.xpose.msra.mxu0 0.0
    %855 = vmatprep.subr.mxu0 0.0
    %856 = vmatpush1.xpose.msra.mxu0 0.0
    %857 = vmatprep.subr.mxu0 0.0
    %858 = vmatpush1.xpose.msra.mxu0 0.0
    %859 = vmatprep.subr.mxu0 0.0
    %860 = vmatpush1.xpose.msra.mxu0 0.0
    %861 = vmatprep.subr.mxu0 0.0
    %862 = vmatpush1.xpose.msra.mxu0 0.0
    %863 = vmatprep.subr.mxu0 0.0
    %864 = vmatpush1.xpose.msra.mxu0 0.0
    %865 = vmatprep.subr.mxu0 0.0
    %866 = vmatpush1.xpose.msra.mxu0 0.0
    %867 = vmatprep.subr.mxu0 0.0
    %868 = vmatpush1.xpose.msra.mxu0 0.0
    %869 = vmatprep.subr.mxu0 0.0
    %870 = vmatpush1.xpose.msra.mxu0 0.0
    %871 = vmatprep.subr.mxu0 0.0
    %872 = vmatpush1.xpose.msra.mxu0 0.0
    %873 = vmatprep.subr.mxu0 0.0
    %874 = vmatpush1.xpose.msra.mxu0 0.0
    %875 = vmatprep.subr.mxu0 0.0
    %876 = vmatpush1.xpose.msra.mxu0 0.0
    %877 = vmatprep.subr.mxu0 0.0
    %878 = vmatpush1.xpose.msra.mxu0 0.0
    %879 = vmatprep.subr.mxu0 0.0
    %880 = vmatpush1.xpose.msra.mxu0 0.0
    %881 = vmatprep.subr.mxu0 0.0
    %882 = vmatpush1.xpose.msra.mxu0 0.0
    %883 = vmatprep.subr.mxu0 0.0
    %884 = vmatpush1.xpose.msra.mxu0 0.0
    %885 = vmatprep.subr.mxu0 0.0
    %886 = vmatpush1.xpose.msra.mxu0 0.0
    %887 = vmatprep.subr.mxu0 0.0
    %888 = vmatpush1.xpose.msra.mxu0 0.0
    %889 = vmatprep.subr.mxu0 0.0
    %890 = vmatpush1.xpose.msra.mxu0 0.0
    %891 = vmatprep.subr.mxu0 0.0
    %892 = vmatpush1.xpose.msra.mxu0 0.0
    %893 = vmatprep.subr.mxu0 0.0
    %894 = vmatpush1.xpose.msra.mxu0 0.0
    %895 = vmatprep.subr.mxu0 0.0
    %896 = vmatpush1.xpose.msra.mxu0 0.0
    %897 = vmatprep.subr.mxu0 0.0
    %898 = vmatpush1.xpose.msra.mxu0 0.0
    %899 = vmatprep.subr.mxu0 0.0
    %900 = vmatpush1.xpose.msra.mxu0 0.0
    %901 = vmatprep.subr.mxu0 0.0
    %902 = vmatpush1.xpose.msra.mxu0 0.0
    %903 = vmatprep.subr.mxu0 0.0
    %904 = vmatpush1.xpose.msra.mxu0 0.0
    %905 = vmatprep.subr.mxu0 0.0
    %906 = vmatpush1.xpose.msra.mxu0 0.0
    %907 = vmatprep.subr.mxu0 0.0
    %908 = vmatpush1.xpose.msra.mxu0 0.0
    %909 = vmatprep.mubr.f32.mxu0 0.0
    %910 = vmatmul.mubr.f32.gmra.mrb[0].mxu0 %v841
    %v911 = vpop.f32.mrb[0].mxu0
    %v912 = vadd.f32 0.0, %v911
    %v913 = vpop.f32.mrb[0].mxu0
    %914 = vdwg.mxu0
    %915 = vrot.lane.b32.xlu0 %v166, 112
    %v916 = vpop.permute.xlu0 %915
    %v917 = vsel %vm384, %v166, 0
    %v919 = vsel %vm384, %v916, 0
    %921 = vmatprep.subr.mxu0 0.0
    %922 = vmatpush1.xpose.msra.mxu0 %v919
    %923 = vmatprep.subr.mxu0 0.0
    %924 = vmatpush1.xpose.msra.mxu0 0.0
    %925 = vmatprep.subr.mxu0 0.0
    %926 = vmatpush1.xpose.msra.mxu0 0.0
    %927 = vmatprep.subr.mxu0 0.0
    %928 = vmatpush1.xpose.msra.mxu0 0.0
    %929 = vmatprep.subr.mxu0 0.0
    %930 = vmatpush1.xpose.msra.mxu0 0.0
    %931 = vmatprep.subr.mxu0 0.0
    %932 = vmatpush1.xpose.msra.mxu0 0.0
    %933 = vmatprep.subr.mxu0 0.0
    %934 = vmatpush1.xpose.msra.mxu0 0.0
    %935 = vmatprep.subr.mxu0 0.0
    %936 = vmatpush1.xpose.msra.mxu0 0.0
    %937 = vmatprep.subr.mxu0 0.0
    %938 = vmatpush1.xpose.msra.mxu0 0.0
    %939 = vmatprep.subr.mxu0 0.0
    %940 = vmatpush1.xpose.msra.mxu0 0.0
    %941 = vmatprep.subr.mxu0 0.0
    %942 = vmatpush1.xpose.msra.mxu0 0.0
    %943 = vmatprep.subr.mxu0 0.0
    %944 = vmatpush1.xpose.msra.mxu0 0.0
    %945 = vmatprep.subr.mxu0 0.0
    %946 = vmatpush1.xpose.msra.mxu0 0.0
    %947 = vmatprep.subr.mxu0 0.0
    %948 = vmatpush1.xpose.msra.mxu0 0.0
    %949 = vmatprep.subr.mxu0 0.0
    %950 = vmatpush1.xpose.msra.mxu0 0.0
    %951 = vmatprep.subr.mxu0 0.0
    %952 = vmatpush1.xpose.msra.mxu0 0.0
    %953 = vmatprep.subr.mxu0 0.0
    %954 = vmatpush1.xpose.msra.mxu0 0.0
    %955 = vmatprep.subr.mxu0 0.0
    %956 = vmatpush1.xpose.msra.mxu0 0.0
    %957 = vmatprep.subr.mxu0 0.0
    %958 = vmatpush1.xpose.msra.mxu0 0.0
    %959 = vmatprep.subr.mxu0 0.0
    %960 = vmatpush1.xpose.msra.mxu0 0.0
    %961 = vmatprep.subr.mxu0 0.0
    %962 = vmatpush1.xpose.msra.mxu0 0.0
    %963 = vmatprep.subr.mxu0 0.0
    %964 = vmatpush1.xpose.msra.mxu0 0.0
    %965 = vmatprep.subr.mxu0 0.0
    %966 = vmatpush1.xpose.msra.mxu0 0.0
    %967 = vmatprep.subr.mxu0 0.0
    %968 = vmatpush1.xpose.msra.mxu0 0.0
    %969 = vmatprep.subr.mxu0 0.0
    %970 = vmatpush1.xpose.msra.mxu0 0.0
    %971 = vmatprep.subr.mxu0 0.0
    %972 = vmatpush1.xpose.msra.mxu0 0.0
    %973 = vmatprep.subr.mxu0 0.0
    %974 = vmatpush1.xpose.msra.mxu0 0.0
    %975 = vmatprep.subr.mxu0 0.0
    %976 = vmatpush1.xpose.msra.mxu0 0.0
    %977 = vmatprep.subr.mxu0 0.0
    %978 = vmatpush1.xpose.msra.mxu0 0.0
    %979 = vmatprep.subr.mxu0 0.0
    %980 = vmatpush1.xpose.msra.mxu0 0.0
    %981 = vmatprep.subr.mxu0 0.0
    %982 = vmatpush1.xpose.msra.mxu0 0.0
    %983 = vmatprep.subr.mxu0 0.0
    %984 = vmatpush1.xpose.msra.mxu0 0.0
    %985 = vmatprep.mubr.f32.mxu0 0.0
    %986 = vmatmul.mubr.f32.gmra.mrb[0].mxu0 %v917
    %v987 = vpop.f32.mrb[0].mxu0
    %v988 = vadd.f32 0.0, %v987
    %v989 = vpop.f32.mrb[0].mxu0
    %990 = vdwg.mxu0
    %v991 = vmul.f32 %v456, 0.5
    %v992 = vmul.f32 %v532, 0.5
    %v993 = vmul.f32 %v608, 0.5
    %v994 = vmul.f32 %v684, 0.5
    %v995 = vmul.f32 %v760, 0.5
    %v996 = vmul.f32 %v836, 0.5
    %v997 = vmul.f32 %v912, 0.5
    %v998 = vmul.f32 %v988, 0.5
    %v999 = vsel %vm374, %v991, -1e+09
    %v1000 = vsel %vm375, %v992, -1e+09
    %v1001 = vsel %vm376, %v993, -1e+09
    %v1002 = vsel %vm377, %v994, -1e+09
    %v1003 = vsel %vm378, %v995, -1e+09
    %v1004 = vsel %vm379, %v996, -1e+09
    %v1005 = vsel %vm380, %v997, -1e+09
    %v1006 = vsel %vm381, %v998, -1e+09
    %vm1007 = vcmask 64512
    %v1008 = vsel %vm1007, %v999, -inf
    %1009 = vmax.xlane.f32.xlu0 %v1008
    %v1010 = vpop.xlane.xlu0 %1009
    %v1011 = vsel %vm1007, %v1000, -inf
    %1012 = vmax.xlane.f32.xlu0 %v1011
    %v1013 = vpop.xlane.xlu0 %1012
    %v1014 = vsel %vm1007, %v1001, -inf
    %1015 = vmax.xlane.f32.xlu0 %v1014
    %v1016 = vpop.xlane.xlu0 %1015
    %v1017 = vsel %vm1007, %v1002, -inf
    %1018 = vmax.xlane.f32.xlu0 %v1017
    %v1019 = vpop.xlane.xlu0 %1018
    %v1020 = vsel %vm1007, %v1003, -inf
    %1021 = vmax.xlane.f32.xlu0 %v1020
    %v1022 = vpop.xlane.xlu0 %1021
    %v1023 = vsel %vm1007, %v1004, -inf
    %1024 = vmax.xlane.f32.xlu0 %v1023
    %v1025 = vpop.xlane.xlu0 %1024
    %v1026 = vsel %vm1007, %v1005, -inf
    %1027 = vmax.xlane.f32.xlu0 %v1026
    %v1028 = vpop.xlane.xlu0 %1027
    %v1029 = vsel %vm1007, %v1006, -inf
    %1030 = vmax.xlane.f32.xlu0 %v1029
    %v1031 = vpop.xlane.xlu0 %1030
    %v1032 = vsub.f32 %v999, %v1010
    %v1033 = vsub.f32 %v1000, %v1013
    %v1034 = vsub.f32 %v1001, %v1016
    %v1035 = vsub.f32 %v1002, %v1019
    %v1036 = vsub.f32 %v1003, %v1022
    %v1037 = vsub.f32 %v1004, %v1025
    %v1038 = vsub.f32 %v1005, %v1028
    %v1039 = vsub.f32 %v1006, %v1031
    %v1040 = vmul.f32 %v1032, 1.442695
    %v1041 = vpow.pop %v1040
    %v1042 = vmul.f32 %v1033, 1.442695
    %v1043 = vpow.pop %v1042
    %v1044 = vmul.f32 %v1034, 1.442695
    %v1045 = vpow.pop %v1044
    %v1046 = vmul.f32 %v1035, 1.442695
    %v1047 = vpow.pop %v1046
    %v1048 = vmul.f32 %v1036, 1.442695
    %v1049 = vpow.pop %v1048
    %v1050 = vmul.f32 %v1037, 1.442695
    %v1051 = vpow.pop %v1050
    %v1052 = vmul.f32 %v1038, 1.442695
    %v1053 = vpow.pop %v1052
    %v1054 = vmul.f32 %v1039, 1.442695
    %v1055 = vpow.pop %v1054
    %v1056 = vsel %vm1007, %v1041, 0.0
    %1057 = vadd.xlane.f32.xlu0 %v1056
    %v1058 = vpop.xlane.xlu0 %1057
    %v1059 = vsel %vm1007, %v1043, 0.0
    %1060 = vadd.xlane.f32.xlu0 %v1059
    %v1061 = vpop.xlane.xlu0 %1060
    %v1062 = vsel %vm1007, %v1045, 0.0
    %1063 = vadd.xlane.f32.xlu0 %v1062
    %v1064 = vpop.xlane.xlu0 %1063
    %v1065 = vsel %vm1007, %v1047, 0.0
    %1066 = vadd.xlane.f32.xlu0 %v1065
    %v1067 = vpop.xlane.xlu0 %1066
    %v1068 = vsel %vm1007, %v1049, 0.0
    %1069 = vadd.xlane.f32.xlu0 %v1068
    %v1070 = vpop.xlane.xlu0 %1069
    %v1071 = vsel %vm1007, %v1051, 0.0
    %1072 = vadd.xlane.f32.xlu0 %v1071
    %v1073 = vpop.xlane.xlu0 %1072
    %v1074 = vsel %vm1007, %v1053, 0.0
    %1075 = vadd.xlane.f32.xlu0 %v1074
    %v1076 = vpop.xlane.xlu0 %1075
    %v1077 = vsel %vm1007, %v1055, 0.0
    %1078 = vadd.xlane.f32.xlu0 %v1077
    %v1079 = vpop.xlane.xlu0 %1078
    %v1080 = vrcp.pop %v1058
    %v1081 = vmul.f32 %v1041, %v1080
    %v1082 = vrcp.pop %v1061
    %v1083 = vmul.f32 %v1043, %v1082
    %v1084 = vrcp.pop %v1064
    %v1085 = vmul.f32 %v1045, %v1084
    %v1086 = vrcp.pop %v1067
    %v1087 = vmul.f32 %v1047, %v1086
    %v1088 = vrcp.pop %v1070
    %v1089 = vmul.f32 %v1049, %v1088
    %v1090 = vrcp.pop %v1073
    %v1091 = vmul.f32 %v1051, %v1090
    %v1092 = vrcp.pop %v1076
    %v1093 = vmul.f32 %v1053, %v1092
    %v1094 = vrcp.pop %v1079
    %v1095 = vmul.f32 %v1055, %v1094
    %1096 = vrot.lane.b32.xlu0 %v145, 96
    %v1097 = vpop.permute.xlu0 %1096
    %v1100 = vsel %vm1007, %v1081, 0
    %1102 = vmatprep.subr.mxu0 0.0
    %1103 = vmatpush1.msra.mxu0 %v1097
    %1104 = vmatprep.subr.mxu0 0.0
    %1105 = vmatpush1.msra.mxu0 0.0
    %1106 = vmatprep.subr.mxu0 0.0
    %1107 = vmatpush1.msra.mxu0 0.0
    %1108 = vmatprep.subr.mxu0 0.0
    %1109 = vmatpush1.msra.mxu0 0.0
    %1110 = vmatprep.subr.mxu0 0.0
    %1111 = vmatpush1.msra.mxu0 0.0
    %1112 = vmatprep.subr.mxu0 0.0
    %1113 = vmatpush1.msra.mxu0 0.0
    %1114 = vmatprep.subr.mxu0 0.0
    %1115 = vmatpush1.msra.mxu0 0.0
    %1116 = vmatprep.subr.mxu0 0.0
    %1117 = vmatpush1.msra.mxu0 0.0
    %1118 = vmatprep.subr.mxu0 0.0
    %1119 = vmatpush1.msra.mxu0 0.0
    %1120 = vmatprep.subr.mxu0 0.0
    %1121 = vmatpush1.msra.mxu0 0.0
    %1122 = vmatprep.subr.mxu0 0.0
    %1123 = vmatpush1.msra.mxu0 0.0
    %1124 = vmatprep.subr.mxu0 0.0
    %1125 = vmatpush1.msra.mxu0 0.0
    %1126 = vmatprep.subr.mxu0 0.0
    %1127 = vmatpush1.msra.mxu0 0.0
    %1128 = vmatprep.subr.mxu0 0.0
    %1129 = vmatpush1.msra.mxu0 0.0
    %1130 = vmatprep.subr.mxu0 0.0
    %1131 = vmatpush1.msra.mxu0 0.0
    %1132 = vmatprep.subr.mxu0 0.0
    %1133 = vmatpush1.msra.mxu0 0.0
    %1134 = vmatprep.subr.mxu0 0.0
    %1135 = vmatpush1.msra.mxu0 0.0
    %1136 = vmatprep.subr.mxu0 0.0
    %1137 = vmatpush1.msra.mxu0 0.0
    %1138 = vmatprep.subr.mxu0 0.0
    %1139 = vmatpush1.msra.mxu0 0.0
    %1140 = vmatprep.subr.mxu0 0.0
    %1141 = vmatpush1.msra.mxu0 0.0
    %1142 = vmatprep.subr.mxu0 0.0
    %1143 = vmatpush1.msra.mxu0 0.0
    %1144 = vmatprep.subr.mxu0 0.0
    %1145 = vmatpush1.msra.mxu0 0.0
    %1146 = vmatprep.subr.mxu0 0.0
    %1147 = vmatpush1.msra.mxu0 0.0
    %1148 = vmatprep.subr.mxu0 0.0
    %1149 = vmatpush1.msra.mxu0 0.0
    %1150 = vmatprep.subr.mxu0 0.0
    %1151 = vmatpush1.msra.mxu0 0.0
    %1152 = vmatprep.subr.mxu0 0.0
    %1153 = vmatpush1.msra.mxu0 0.0
    %1154 = vmatprep.subr.mxu0 0.0
    %1155 = vmatpush1.msra.mxu0 0.0
    %1156 = vmatprep.subr.mxu0 0.0
    %1157 = vmatpush1.msra.mxu0 0.0
    %1158 = vmatprep.subr.mxu0 0.0
    %1159 = vmatpush1.msra.mxu0 0.0
    %1160 = vmatprep.subr.mxu0 0.0
    %1161 = vmatpush1.msra.mxu0 0.0
    %1162 = vmatprep.subr.mxu0 0.0
    %1163 = vmatpush1.msra.mxu0 0.0
    %1164 = vmatprep.subr.mxu0 0.0
    %1165 = vmatpush1.msra.mxu0 0.0
    %1166 = vmatprep.mubr.f32.mxu0 0.0
    %1167 = vmatmul.mubr.f32.gmra.mrb[0].mxu0 %v1100
    %v1168 = vpop.f32.mrb[0].mxu0
    %v1169 = vadd.f32 0.0, %v1168
    %v1170 = vpop.f32.mrb[0].mxu0
    %1171 = vdwg.mxu0
    %1172 = vrot.lane.b32.xlu0 %v150, 96
    %v1173 = vpop.permute.xlu0 %1172
    %v1176 = vsel %vm1007, %v1083, 0
    %1178 = vmatprep.subr.mxu0 0.0
    %1179 = vmatpush1.msra.mxu0 %v1173
    %1180 = vmatprep.subr.mxu0 0.0
    %1181 = vmatpush1.msra.mxu0 0.0
    %1182 = vmatprep.subr.mxu0 0.0
    %1183 = vmatpush1.msra.mxu0 0.0
    %1184 = vmatprep.subr.mxu0 0.0
    %1185 = vmatpush1.msra.mxu0 0.0
    %1186 = vmatprep.subr.mxu0 0.0
    %1187 = vmatpush1.msra.mxu0 0.0
    %1188 = vmatprep.subr.mxu0 0.0
    %1189 = vmatpush1.msra.mxu0 0.0
    %1190 = vmatprep.subr.mxu0 0.0
    %1191 = vmatpush1.msra.mxu0 0.0
    %1192 = vmatprep.subr.mxu0 0.0
    %1193 = vmatpush1.msra.mxu0 0.0
    %1194 = vmatprep.subr.mxu0 0.0
    %1195 = vmatpush1.msra.mxu0 0.0
    %1196 = vmatprep.subr.mxu0 0.0
    %1197 = vmatpush1.msra.mxu0 0.0
    %1198 = vmatprep.subr.mxu0 0.0
    %1199 = vmatpush1.msra.mxu0 0.0
    %1200 = vmatprep.subr.mxu0 0.0
    %1201 = vmatpush1.msra.mxu0 0.0
    %1202 = vmatprep.subr.mxu0 0.0
    %1203 = vmatpush1.msra.mxu0 0.0
    %1204 = vmatprep.subr.mxu0 0.0
    %1205 = vmatpush1.msra.mxu0 0.0
    %1206 = vmatprep.subr.mxu0 0.0
    %1207 = vmatpush1.msra.mxu0 0.0
    %1208 = vmatprep.subr.mxu0 0.0
    %1209 = vmatpush1.msra.mxu0 0.0
    %1210 = vmatprep.subr.mxu0 0.0
    %1211 = vmatpush1.msra.mxu0 0.0
    %1212 = vmatprep.subr.mxu0 0.0
    %1213 = vmatpush1.msra.mxu0 0.0
    %1214 = vmatprep.subr.mxu0 0.0
    %1215 = vmatpush1.msra.mxu0 0.0
    %1216 = vmatprep.subr.mxu0 0.0
    %1217 = vmatpush1.msra.mxu0 0.0
    %1218 = vmatprep.subr.mxu0 0.0
    %1219 = vmatpush1.msra.mxu0 0.0
    %1220 = vmatprep.subr.mxu0 0.0
    %1221 = vmatpush1.msra.mxu0 0.0
    %1222 = vmatprep.subr.mxu0 0.0
    %1223 = vmatpush1.msra.mxu0 0.0
    %1224 = vmatprep.subr.mxu0 0.0
    %1225 = vmatpush1.msra.mxu0 0.0
    %1226 = vmatprep.subr.mxu0 0.0
    %1227 = vmatpush1.msra.mxu0 0.0
    %1228 = vmatprep.subr.mxu0 0.0
    %1229 = vmatpush1.msra.mxu0 0.0
    %1230 = vmatprep.subr.mxu0 0.0
    %1231 = vmatpush1.msra.mxu0 0.0
    %1232 = vmatprep.subr.mxu0 0.0
    %1233 = vmatpush1.msra.mxu0 0.0
    %1234 = vmatprep.subr.mxu0 0.0
    %1235 = vmatpush1.msra.mxu0 0.0
    %1236 = vmatprep.subr.mxu0 0.0
    %1237 = vmatpush1.msra.mxu0 0.0
    %1238 = vmatprep.subr.mxu0 0.0
    %1239 = vmatpush1.msra.mxu0 0.0
    %1240 = vmatprep.subr.mxu0 0.0
    %1241 = vmatpush1.msra.mxu0 0.0
    %1242 = vmatprep.mubr.f32.mxu0 0.0
    %1243 = vmatmul.mubr.f32.gmra.mrb[0].mxu0 %v1176
    %v1244 = vpop.f32.mrb[0].mxu0
    %v1245 = vadd.f32 0.0, %v1244
    %v1246 = vpop.f32.mrb[0].mxu0
    %1247 = vdwg.mxu0
    %1248 = vrot.lane.b32.xlu0 %v156, 96
    %v1249 = vpop.permute.xlu0 %1248
    %v1252 = vsel %vm1007, %v1085, 0
    %1254 = vmatprep.subr.mxu0 0.0
    %1255 = vmatpush1.msra.mxu0 %v1249
    %1256 = vmatprep.subr.mxu0 0.0
    %1257 = vmatpush1.msra.mxu0 0.0
    %1258 = vmatprep.subr.mxu0 0.0
    %1259 = vmatpush1.msra.mxu0 0.0
    %1260 = vmatprep.subr.mxu0 0.0
    %1261 = vmatpush1.msra.mxu0 0.0
    %1262 = vmatprep.subr.mxu0 0.0
    %1263 = vmatpush1.msra.mxu0 0.0
    %1264 = vmatprep.subr.mxu0 0.0
    %1265 = vmatpush1.msra.mxu0 0.0
    %1266 = vmatprep.subr.mxu0 0.0
    %1267 = vmatpush1.msra.mxu0 0.0
    %1268 = vmatprep.subr.mxu0 0.0
    %1269 = vmatpush1.msra.mxu0 0.0
    %1270 = vmatprep.subr.mxu0 0.0
    %1271 = vmatpush1.msra.mxu0 0.0
    %1272 = vmatprep.subr.mxu0 0.0
    %1273 = vmatpush1.msra.mxu0 0.0
    %1274 = vmatprep.subr.mxu0 0.0
    %1275 = vmatpush1.msra.mxu0 0.0
    %1276 = vmatprep.subr.mxu0 0.0
    %1277 = vmatpush1.msra.mxu0 0.0
    %1278 = vmatprep.subr.mxu0 0.0
    %1279 = vmatpush1.msra.mxu0 0.0
    %1280 = vmatprep.subr.mxu0 0.0
    %1281 = vmatpush1.msra.mxu0 0.0
    %1282 = vmatprep.subr.mxu0 0.0
    %1283 = vmatpush1.msra.mxu0 0.0
    %1284 = vmatprep.subr.mxu0 0.0
    %1285 = vmatpush1.msra.mxu0 0.0
    %1286 = vmatprep.subr.mxu0 0.0
    %1287 = vmatpush1.msra.mxu0 0.0
    %1288 = vmatprep.subr.mxu0 0.0
    %1289 = vmatpush1.msra.mxu0 0.0
    %1290 = vmatprep.subr.mxu0 0.0
    %1291 = vmatpush1.msra.mxu0 0.0
    %1292 = vmatprep.subr.mxu0 0.0
    %1293 = vmatpush1.msra.mxu0 0.0
    %1294 = vmatprep.subr.mxu0 0.0
    %1295 = vmatpush1.msra.mxu0 0.0
    %1296 = vmatprep.subr.mxu0 0.0
    %1297 = vmatpush1.msra.mxu0 0.0
    %1298 = vmatprep.subr.mxu0 0.0
    %1299 = vmatpush1.msra.mxu0 0.0
    %1300 = vmatprep.subr.mxu0 0.0
    %1301 = vmatpush1.msra.mxu0 0.0
    %1302 = vmatprep.subr.mxu0 0.0
    %1303 = vmatpush1.msra.mxu0 0.0
    %1304 = vmatprep.subr.mxu0 0.0
    %1305 = vmatpush1.msra.mxu0 0.0
    %1306 = vmatprep.subr.mxu0 0.0
    %1307 = vmatpush1.msra.mxu0 0.0
    %1308 = vmatprep.subr.mxu0 0.0
    %1309 = vmatpush1.msra.mxu0 0.0
    %1310 = vmatprep.subr.mxu0 0.0
    %1311 = vmatpush1.msra.mxu0 0.0
    %1312 = vmatprep.subr.mxu0 0.0
    %1313 = vmatpush1.msra.mxu0 0.0
    %1314 = vmatprep.subr.mxu0 0.0
    %1315 = vmatpush1.msra.mxu0 0.0
    %1316 = vmatprep.subr.mxu0 0.0
    %1317 = vmatpush1.msra.mxu0 0.0
    %1318 = vmatprep.mubr.f32.mxu0 0.0
    %1319 = vmatmul.mubr.f32.gmra.mrb[0].mxu0 %v1252
    %v1320 = vpop.f32.mrb[0].mxu0
    %v1321 = vadd.f32 0.0, %v1320
    %v1322 = vpop.f32.mrb[0].mxu0
    %1323 = vdwg.mxu0
    %1324 = vrot.lane.b32.xlu0 %v158, 96
    %v1325 = vpop.permute.xlu0 %1324
    %v1328 = vsel %vm1007, %v1087, 0
    %1330 = vmatprep.subr.mxu0 0.0
    %1331 = vmatpush1.msra.mxu0 %v1325
    %1332 = vmatprep.subr.mxu0 0.0
    %1333 = vmatpush1.msra.mxu0 0.0
    %1334 = vmatprep.subr.mxu0 0.0
    %1335 = vmatpush1.msra.mxu0 0.0
    %1336 = vmatprep.subr.mxu0 0.0
    %1337 = vmatpush1.msra.mxu0 0.0
    %1338 = vmatprep.subr.mxu0 0.0
    %1339 = vmatpush1.msra.mxu0 0.0
    %1340 = vmatprep.subr.mxu0 0.0
    %1341 = vmatpush1.msra.mxu0 0.0
    %1342 = vmatprep.subr.mxu0 0.0
    %1343 = vmatpush1.msra.mxu0 0.0
    %1344 = vmatprep.subr.mxu0 0.0
    %1345 = vmatpush1.msra.mxu0 0.0
    %1346 = vmatprep.subr.mxu0 0.0
    %1347 = vmatpush1.msra.mxu0 0.0
    %1348 = vmatprep.subr.mxu0 0.0
    %1349 = vmatpush1.msra.mxu0 0.0
    %1350 = vmatprep.subr.mxu0 0.0
    %1351 = vmatpush1.msra.mxu0 0.0
    %1352 = vmatprep.subr.mxu0 0.0
    %1353 = vmatpush1.msra.mxu0 0.0
    %1354 = vmatprep.subr.mxu0 0.0
    %1355 = vmatpush1.msra.mxu0 0.0
    %1356 = vmatprep.subr.mxu0 0.0
    %1357 = vmatpush1.msra.mxu0 0.0
    %1358 = vmatprep.subr.mxu0 0.0
    %1359 = vmatpush1.msra.mxu0 0.0
    %1360 = vmatprep.subr.mxu0 0.0
    %1361 = vmatpush1.msra.mxu0 0.0
    %1362 = vmatprep.subr.mxu0 0.0
    %1363 = vmatpush1.msra.mxu0 0.0
    %1364 = vmatprep.subr.mxu0 0.0
    %1365 = vmatpush1.msra.mxu0 0.0
    %1366 = vmatprep.subr.mxu0 0.0
    %1367 = vmatpush1.msra.mxu0 0.0
    %1368 = vmatprep.subr.mxu0 0.0
    %1369 = vmatpush1.msra.mxu0 0.0
    %1370 = vmatprep.subr.mxu0 0.0
    %1371 = vmatpush1.msra.mxu0 0.0
    %1372 = vmatprep.subr.mxu0 0.0
    %1373 = vmatpush1.msra.mxu0 0.0
    %1374 = vmatprep.subr.mxu0 0.0
    %1375 = vmatpush1.msra.mxu0 0.0
    %1376 = vmatprep.subr.mxu0 0.0
    %1377 = vmatpush1.msra.mxu0 0.0
    %1378 = vmatprep.subr.mxu0 0.0
    %1379 = vmatpush1.msra.mxu0 0.0
    %1380 = vmatprep.subr.mxu0 0.0
    %1381 = vmatpush1.msra.mxu0 0.0
    %1382 = vmatprep.subr.mxu0 0.0
    %1383 = vmatpush1.msra.mxu0 0.0
    %1384 = vmatprep.subr.mxu0 0.0
    %1385 = vmatpush1.msra.mxu0 0.0
    %1386 = vmatprep.subr.mxu0 0.0
    %1387 = vmatpush1.msra.mxu0 0.0
    %1388 = vmatprep.subr.mxu0 0.0
    %1389 = vmatpush1.msra.mxu0 0.0
    %1390 = vmatprep.subr.mxu0 0.0
    %1391 = vmatpush1.msra.mxu0 0.0
    %1392 = vmatprep.subr.mxu0 0.0
    %1393 = vmatpush1.msra.mxu0 0.0
    %1394 = vmatprep.mubr.f32.mxu0 0.0
    %1395 = vmatmul.mubr.f32.gmra.mrb[0].mxu0 %v1328
    %v1396 = vpop.f32.mrb[0].mxu0
    %v1397 = vadd.f32 0.0, %v1396
    %v1398 = vpop.f32.mrb[0].mxu0
    %1399 = vdwg.mxu0
    %1400 = vrot.lane.b32.xlu0 %v160, 96
    %v1401 = vpop.permute.xlu0 %1400
    %v1404 = vsel %vm1007, %v1089, 0
    %1406 = vmatprep.subr.mxu0 0.0
    %1407 = vmatpush1.msra.mxu0 %v1401
    %1408 = vmatprep.subr.mxu0 0.0
    %1409 = vmatpush1.msra.mxu0 0.0
    %1410 = vmatprep.subr.mxu0 0.0
    %1411 = vmatpush1.msra.mxu0 0.0
    %1412 = vmatprep.subr.mxu0 0.0
    %1413 = vmatpush1.msra.mxu0 0.0
    %1414 = vmatprep.subr.mxu0 0.0
    %1415 = vmatpush1.msra.mxu0 0.0
    %1416 = vmatprep.subr.mxu0 0.0
    %1417 = vmatpush1.msra.mxu0 0.0
    %1418 = vmatprep.subr.mxu0 0.0
    %1419 = vmatpush1.msra.mxu0 0.0
    %1420 = vmatprep.subr.mxu0 0.0
    %1421 = vmatpush1.msra.mxu0 0.0
    %1422 = vmatprep.subr.mxu0 0.0
    %1423 = vmatpush1.msra.mxu0 0.0
    %1424 = vmatprep.subr.mxu0 0.0
    %1425 = vmatpush1.msra.mxu0 0.0
    %1426 = vmatprep.subr.mxu0 0.0
    %1427 = vmatpush1.msra.mxu0 0.0
    %1428 = vmatprep.subr.mxu0 0.0
    %1429 = vmatpush1.msra.mxu0 0.0
    %1430 = vmatprep.subr.mxu0 0.0
    %1431 = vmatpush1.msra.mxu0 0.0
    %1432 = vmatprep.subr.mxu0 0.0
    %1433 = vmatpush1.msra.mxu0 0.0
    %1434 = vmatprep.subr.mxu0 0.0
    %1435 = vmatpush1.msra.mxu0 0.0
    %1436 = vmatprep.subr.mxu0 0.0
    %1437 = vmatpush1.msra.mxu0 0.0
    %1438 = vmatprep.subr.mxu0 0.0
    %1439 = vmatpush1.msra.mxu0 0.0
    %1440 = vmatprep.subr.mxu0 0.0
    %1441 = vmatpush1.msra.mxu0 0.0
    %1442 = vmatprep.subr.mxu0 0.0
    %1443 = vmatpush1.msra.mxu0 0.0
    %1444 = vmatprep.subr.mxu0 0.0
    %1445 = vmatpush1.msra.mxu0 0.0
    %1446 = vmatprep.subr.mxu0 0.0
    %1447 = vmatpush1.msra.mxu0 0.0
    %1448 = vmatprep.subr.mxu0 0.0
    %1449 = vmatpush1.msra.mxu0 0.0
    %1450 = vmatprep.subr.mxu0 0.0
    %1451 = vmatpush1.msra.mxu0 0.0
    %1452 = vmatprep.subr.mxu0 0.0
    %1453 = vmatpush1.msra.mxu0 0.0
    %1454 = vmatprep.subr.mxu0 0.0
    %1455 = vmatpush1.msra.mxu0 0.0
    %1456 = vmatprep.subr.mxu0 0.0
    %1457 = vmatpush1.msra.mxu0 0.0
    %1458 = vmatprep.subr.mxu0 0.0
    %1459 = vmatpush1.msra.mxu0 0.0
    %1460 = vmatprep.subr.mxu0 0.0
    %1461 = vmatpush1.msra.mxu0 0.0
    %1462 = vmatprep.subr.mxu0 0.0
    %1463 = vmatpush1.msra.mxu0 0.0
    %1464 = vmatprep.subr.mxu0 0.0
    %1465 = vmatpush1.msra.mxu0 0.0
    %1466 = vmatprep.subr.mxu0 0.0
    %1467 = vmatpush1.msra.mxu0 0.0
    %1468 = vmatprep.subr.mxu0 0.0
    %1469 = vmatpush1.msra.mxu0 0.0
    %1470 = vmatprep.mubr.f32.mxu0 0.0
    %1471 = vmatmul.mubr.f32.gmra.mrb[0].mxu0 %v1404
    %v1472 = vpop.f32.mrb[0].mxu0
    %v1473 = vadd.f32 0.0, %v1472
    %v1474 = vpop.f32.mrb[0].mxu0
    %1475 = vdwg.mxu0
    %1476 = vrot.lane.b32.xlu0 %v162, 96
    %v1477 = vpop.permute.xlu0 %1476
    %v1480 = vsel %vm1007, %v1091, 0
    %1482 = vmatprep.subr.mxu0 0.0
    %1483 = vmatpush1.msra.mxu0 %v1477
    %1484 = vmatprep.subr.mxu0 0.0
    %1485 = vmatpush1.msra.mxu0 0.0
    %1486 = vmatprep.subr.mxu0 0.0
    %1487 = vmatpush1.msra.mxu0 0.0
    %1488 = vmatprep.subr.mxu0 0.0
    %1489 = vmatpush1.msra.mxu0 0.0
    %1490 = vmatprep.subr.mxu0 0.0
    %1491 = vmatpush1.msra.mxu0 0.0
    %1492 = vmatprep.subr.mxu0 0.0
    %1493 = vmatpush1.msra.mxu0 0.0
    %1494 = vmatprep.subr.mxu0 0.0
    %1495 = vmatpush1.msra.mxu0 0.0
    %1496 = vmatprep.subr.mxu0 0.0
    %1497 = vmatpush1.msra.mxu0 0.0
    %1498 = vmatprep.subr.mxu0 0.0
    %1499 = vmatpush1.msra.mxu0 0.0
    %1500 = vmatprep.subr.mxu0 0.0
    %1501 = vmatpush1.msra.mxu0 0.0
    %1502 = vmatprep.subr.mxu0 0.0
    %1503 = vmatpush1.msra.mxu0 0.0
    %1504 = vmatprep.subr.mxu0 0.0
    %1505 = vmatpush1.msra.mxu0 0.0
    %1506 = vmatprep.subr.mxu0 0.0
    %1507 = vmatpush1.msra.mxu0 0.0
    %1508 = vmatprep.subr.mxu0 0.0
    %1509 = vmatpush1.msra.mxu0 0.0
    %1510 = vmatprep.subr.mxu0 0.0
    %1511 = vmatpush1.msra.mxu0 0.0
    %1512 = vmatprep.subr.mxu0 0.0
    %1513 = vmatpush1.msra.mxu0 0.0
    %1514 = vmatprep.subr.mxu0 0.0
    %1515 = vmatpush1.msra.mxu0 0.0
    %1516 = vmatprep.subr.mxu0 0.0
    %1517 = vmatpush1.msra.mxu0 0.0
    %1518 = vmatprep.subr.mxu0 0.0
    %1519 = vmatpush1.msra.mxu0 0.0
    %1520 = vmatprep.subr.mxu0 0.0
    %1521 = vmatpush1.msra.mxu0 0.0
    %1522 = vmatprep.subr.mxu0 0.0
    %1523 = vmatpush1.msra.mxu0 0.0
    %1524 = vmatprep.subr.mxu0 0.0
    %1525 = vmatpush1.msra.mxu0 0.0
    %1526 = vmatprep.subr.mxu0 0.0
    %1527 = vmatpush1.msra.mxu0 0.0
    %1528 = vmatprep.subr.mxu0 0.0
    %1529 = vmatpush1.msra.mxu0 0.0
    %1530 = vmatprep.subr.mxu0 0.0
    %1531 = vmatpush1.msra.mxu0 0.0
    %1532 = vmatprep.subr.mxu0 0.0
    %1533 = vmatpush1.msra.mxu0 0.0
    %1534 = vmatprep.subr.mxu0 0.0
    %1535 = vmatpush1.msra.mxu0 0.0
    %1536 = vmatprep.subr.mxu0 0.0
    %1537 = vmatpush1.msra.mxu0 0.0
    %1538 = vmatprep.subr.mxu0 0.0
    %1539 = vmatpush1.msra.mxu0 0.0
    %1540 = vmatprep.subr.mxu0 0.0
    %1541 = vmatpush1.msra.mxu0 0.0
    %1542 = vmatprep.subr.mxu0 0.0
    %1543 = vmatpush1.msra.mxu0 0.0
    %1544 = vmatprep.subr.mxu0 0.0
    %1545 = vmatpush1.msra.mxu0 0.0
    %1546 = vmatprep.mubr.f32.mxu0 0.0
    %1547 = vmatmul.mubr.f32.gmra.mrb[0].mxu0 %v1480
    %v1548 = vpop.f32.mrb[0].mxu0
    %v1549 = vadd.f32 0.0, %v1548
    %v1550 = vpop.f32.mrb[0].mxu0
    %1551 = vdwg.mxu0
    %1552 = vrot.lane.b32.xlu0 %v164, 96
    %v1553 = vpop.permute.xlu0 %1552
    %v1556 = vsel %vm1007, %v1093, 0
    %1558 = vmatprep.subr.mxu0 0.0
    %1559 = vmatpush1.msra.mxu0 %v1553
    %1560 = vmatprep.subr.mxu0 0.0
    %1561 = vmatpush1.msra.mxu0 0.0
    %1562 = vmatprep.subr.mxu0 0.0
    %1563 = vmatpush1.msra.mxu0 0.0
    %1564 = vmatprep.subr.mxu0 0.0
    %1565 = vmatpush1.msra.mxu0 0.0
    %1566 = vmatprep.subr.mxu0 0.0
    %1567 = vmatpush1.msra.mxu0 0.0
    %1568 = vmatprep.subr.mxu0 0.0
    %1569 = vmatpush1.msra.mxu0 0.0
    %1570 = vmatprep.subr.mxu0 0.0
    %1571 = vmatpush1.msra.mxu0 0.0
    %1572 = vmatprep.subr.mxu0 0.0
    %1573 = vmatpush1.msra.mxu0 0.0
    %1574 = vmatprep.subr.mxu0 0.0
    %1575 = vmatpush1.msra.mxu0 0.0
    %1576 = vmatprep.subr.mxu0 0.0
    %1577 = vmatpush1.msra.mxu0 0.0
    %1578 = vmatprep.subr.mxu0 0.0
    %1579 = vmatpush1.msra.mxu0 0.0
    %1580 = vmatprep.subr.mxu0 0.0
    %1581 = vmatpush1.msra.mxu0 0.0
    %1582 = vmatprep.subr.mxu0 0.0
    %1583 = vmatpush1.msra.mxu0 0.0
    %1584 = vmatprep.subr.mxu0 0.0
    %1585 = vmatpush1.msra.mxu0 0.0
    %1586 = vmatprep.subr.mxu0 0.0
    %1587 = vmatpush1.msra.mxu0 0.0
    %1588 = vmatprep.subr.mxu0 0.0
    %1589 = vmatpush1.msra.mxu0 0.0
    %1590 = vmatprep.subr.mxu0 0.0
    %1591 = vmatpush1.msra.mxu0 0.0
    %1592 = vmatprep.subr.mxu0 0.0
    %1593 = vmatpush1.msra.mxu0 0.0
    %1594 = vmatprep.subr.mxu0 0.0
    %1595 = vmatpush1.msra.mxu0 0.0
    %1596 = vmatprep.subr.mxu0 0.0
    %1597 = vmatpush1.msra.mxu0 0.0
    %1598 = vmatprep.subr.mxu0 0.0
    %1599 = vmatpush1.msra.mxu0 0.0
    %1600 = vmatprep.subr.mxu0 0.0
    %1601 = vmatpush1.msra.mxu0 0.0
    %1602 = vmatprep.subr.mxu0 0.0
    %1603 = vmatpush1.msra.mxu0 0.0
    %1604 = vmatprep.subr.mxu0 0.0
    %1605 = vmatpush1.msra.mxu0 0.0
    %1606 = vmatprep.subr.mxu0 0.0
    %1607 = vmatpush1.msra.mxu0 0.0
    %1608 = vmatprep.subr.mxu0 0.0
    %1609 = vmatpush1.msra.mxu0 0.0
    %1610 = vmatprep.subr.mxu0 0.0
    %1611 = vmatpush1.msra.mxu0 0.0
    %1612 = vmatprep.subr.mxu0 0.0
    %1613 = vmatpush1.msra.mxu0 0.0
    %1614 = vmatprep.subr.mxu0 0.0
    %1615 = vmatpush1.msra.mxu0 0.0
    %1616 = vmatprep.subr.mxu0 0.0
    %1617 = vmatpush1.msra.mxu0 0.0
    %1618 = vmatprep.subr.mxu0 0.0
    %1619 = vmatpush1.msra.mxu0 0.0
    %1620 = vmatprep.subr.mxu0 0.0
    %1621 = vmatpush1.msra.mxu0 0.0
    %1622 = vmatprep.mubr.f32.mxu0 0.0
    %1623 = vmatmul.mubr.f32.gmra.mrb[0].mxu0 %v1556
    %v1624 = vpop.f32.mrb[0].mxu0
    %v1625 = vadd.f32 0.0, %v1624
    %v1626 = vpop.f32.mrb[0].mxu0
    %1627 = vdwg.mxu0
    %1628 = vrot.lane.b32.xlu0 %v166, 96
    %v1629 = vpop.permute.xlu0 %1628
    %v1632 = vsel %vm1007, %v1095, 0
    %1634 = vmatprep.subr.mxu0 0.0
    %1635 = vmatpush1.msra.mxu0 %v1629
    %1636 = vmatprep.subr.mxu0 0.0
    %1637 = vmatpush1.msra.mxu0 0.0
    %1638 = vmatprep.subr.mxu0 0.0
    %1639 = vmatpush1.msra.mxu0 0.0
    %1640 = vmatprep.subr.mxu0 0.0
    %1641 = vmatpush1.msra.mxu0 0.0
    %1642 = vmatprep.subr.mxu0 0.0
    %1643 = vmatpush1.msra.mxu0 0.0
    %1644 = vmatprep.subr.mxu0 0.0
    %1645 = vmatpush1.msra.mxu0 0.0
    %1646 = vmatprep.subr.mxu0 0.0
    %1647 = vmatpush1.msra.mxu0 0.0
    %1648 = vmatprep.subr.mxu0 0.0
    %1649 = vmatpush1.msra.mxu0 0.0
    %1650 = vmatprep.subr.mxu0 0.0
    %1651 = vmatpush1.msra.mxu0 0.0
    %1652 = vmatprep.subr.mxu0 0.0
    %1653 = vmatpush1.msra.mxu0 0.0
    %1654 = vmatprep.subr.mxu0 0.0
    %1655 = vmatpush1.msra.mxu0 0.0
    %1656 = vmatprep.subr.mxu0 0.0
    %1657 = vmatpush1.msra.mxu0 0.0
    %1658 = vmatprep.subr.mxu0 0.0
    %1659 = vmatpush1.msra.mxu0 0.0
    %1660 = vmatprep.subr.mxu0 0.0
    %1661 = vmatpush1.msra.mxu0 0.0
    %1662 = vmatprep.subr.mxu0 0.0
    %1663 = vmatpush1.msra.mxu0 0.0
    %1664 = vmatprep.subr.mxu0 0.0
    %1665 = vmatpush1.msra.mxu0 0.0
    %1666 = vmatprep.subr.mxu0 0.0
    %1667 = vmatpush1.msra.mxu0 0.0
    %1668 = vmatprep.subr.mxu0 0.0
    %1669 = vmatpush1.msra.mxu0 0.0
    %1670 = vmatprep.subr.mxu0 0.0
    %1671 = vmatpush1.msra.mxu0 0.0
    %1672 = vmatprep.subr.mxu0 0.0
    %1673 = vmatpush1.msra.mxu0 0.0
    %1674 = vmatprep.subr.mxu0 0.0
    %1675 = vmatpush1.msra.mxu0 0.0
    %1676 = vmatprep.subr.mxu0 0.0
    %1677 = vmatpush1.msra.mxu0 0.0
    %1678 = vmatprep.subr.mxu0 0.0
    %1679 = vmatpush1.msra.mxu0 0.0
    %1680 = vmatprep.subr.mxu0 0.0
    %1681 = vmatpush1.msra.mxu0 0.0
    %1682 = vmatprep.subr.mxu0 0.0
    %1683 = vmatpush1.msra.mxu0 0.0
    %1684 = vmatprep.subr.mxu0 0.0
    %1685 = vmatpush1.msra.mxu0 0.0
    %1686 = vmatprep.subr.mxu0 0.0
    %1687 = vmatpush1.msra.mxu0 0.0
    %1688 = vmatprep.subr.mxu0 0.0
    %1689 = vmatpush1.msra.mxu0 0.0
    %1690 = vmatprep.subr.mxu0 0.0
    %1691 = vmatpush1.msra.mxu0 0.0
    %1692 = vmatprep.subr.mxu0 0.0
    %1693 = vmatpush1.msra.mxu0 0.0
    %1694 = vmatprep.subr.mxu0 0.0
    %1695 = vmatpush1.msra.mxu0 0.0
    %1696 = vmatprep.subr.mxu0 0.0
    %1697 = vmatpush1.msra.mxu0 0.0
    %1698 = vmatprep.mubr.f32.mxu0 0.0
    %1699 = vmatmul.mubr.f32.gmra.mrb[0].mxu0 %v1632
    %v1700 = vpop.f32.mrb[0].mxu0
    %v1701 = vadd.f32 0.0, %v1700
    %v1702 = vpop.f32.mrb[0].mxu0
    %1703 = vdwg.mxu0
    %1706 = vrot.lane.b32.xlu0 %v1321, 4
    %v1707 = vpop.permute.xlu0 %1706
    %1708 = vrot.lane.b32.xlu0 %v1397, 4
    %v1709 = vpop.permute.xlu0 %1708
    %1714 = vrot.lane.b32.xlu0 %v1473, 8
    %v1715 = vpop.permute.xlu0 %1714
    %1716 = vrot.lane.b32.xlu0 %v1549, 8
    %v1717 = vpop.permute.xlu0 %1716
    %1722 = vrot.lane.b32.xlu0 %v1625, 12
    %v1723 = vpop.permute.xlu0 %1722
    %1724 = vrot.lane.b32.xlu0 %v1701, 12
    %v1725 = vpop.permute.xlu0 %1724
    %v1728 = vsel %vm384, %v1169, %v1707
    %v1729 = vsel %vm384, %v1245, %v1709
    %v1730 = vsel %vm1007, %v1728, %v1715
    %v1731 = vsel %vm1007, %v1729, %v1717
    %vm1732 = vcmask 97280
    %v1733 = vsel %vm1732, %v1730, %v1723
    %v1734 = vsel %vm1732, %v1731, %v1725
    %v1735 = vlaneseq
    %v1736 = vshrl.u32 %v1735, 7
    %v1737 = vsub.s32 4, %v1736
    %v1738 = vrot.slane %v23, %v1737
    %1741 = vrot.lane.b32.xlu0 %v21, 80
    %v1742 = vpop.permute.xlu0 %1741
    %1743 = vrot.lane.b32.xlu0 %v22, 80
    %v1744 = vpop.permute.xlu0 %1743
    %v1748 = vsel %vm32, %v1733, 0
    %v1751 = vsel %vm32, %v1734, 0
    %1753 = vmatprep.subr.mxu0 0.0
    %1754 = vmatpush1.msra.mxu0 %v1742
    %1755 = vmatprep.subr.mxu0 0.0
    %1756 = vmatpush1.msra.mxu0 %v1744
    %1757 = vmatprep.subr.mxu0 0.0
    %1758 = vmatpush1.msra.mxu0 0.0
    %1759 = vmatprep.subr.mxu0 0.0
    %1760 = vmatpush1.msra.mxu0 0.0
    %1761 = vmatprep.subr.mxu0 0.0
    %1762 = vmatpush1.msra.mxu0 0.0
    %1763 = vmatprep.subr.mxu0 0.0
    %1764 = vmatpush1.msra.mxu0 0.0
    %1765 = vmatprep.subr.mxu0 0.0
    %1766 = vmatpush1.msra.mxu0 0.0
    %1767 = vmatprep.subr.mxu0 0.0
    %1768 = vmatpush1.msra.mxu0 0.0
    %1769 = vmatprep.subr.mxu0 0.0
    %1770 = vmatpush1.msra.mxu0 0.0
    %1771 = vmatprep.subr.mxu0 0.0
    %1772 = vmatpush1.msra.mxu0 0.0
    %1773 = vmatprep.subr.mxu0 0.0
    %1774 = vmatpush1.msra.mxu0 0.0
    %1775 = vmatprep.subr.mxu0 0.0
    %1776 = vmatpush1.msra.mxu0 0.0
    %1777 = vmatprep.subr.mxu0 0.0
    %1778 = vmatpush1.msra.mxu0 0.0
    %1779 = vmatprep.subr.mxu0 0.0
    %1780 = vmatpush1.msra.mxu0 0.0
    %1781 = vmatprep.subr.mxu0 0.0
    %1782 = vmatpush1.msra.mxu0 0.0
    %1783 = vmatprep.subr.mxu0 0.0
    %1784 = vmatpush1.msra.mxu0 0.0
    %1785 = vmatprep.subr.mxu0 0.0
    %1786 = vmatpush1.msra.mxu0 0.0
    %1787 = vmatprep.subr.mxu0 0.0
    %1788 = vmatpush1.msra.mxu0 0.0
    %1789 = vmatprep.subr.mxu0 0.0
    %1790 = vmatpush1.msra.mxu0 0.0
    %1791 = vmatprep.subr.mxu0 0.0
    %1792 = vmatpush1.msra.mxu0 0.0
    %1793 = vmatprep.subr.mxu0 0.0
    %1794 = vmatpush1.msra.mxu0 0.0
    %1795 = vmatprep.subr.mxu0 0.0
    %1796 = vmatpush1.msra.mxu0 0.0
    %1797 = vmatprep.subr.mxu0 0.0
    %1798 = vmatpush1.msra.mxu0 0.0
    %1799 = vmatprep.subr.mxu0 0.0
    %1800 = vmatpush1.msra.mxu0 0.0
    %1801 = vmatprep.subr.mxu0 0.0
    %1802 = vmatpush1.msra.mxu0 0.0
    %1803 = vmatprep.subr.mxu0 0.0
    %1804 = vmatpush1.msra.mxu0 0.0
    %1805 = vmatprep.subr.mxu0 0.0
    %1806 = vmatpush1.msra.mxu0 0.0
    %1807 = vmatprep.subr.mxu0 0.0
    %1808 = vmatpush1.msra.mxu0 0.0
    %1809 = vmatprep.subr.mxu0 0.0
    %1810 = vmatpush1.msra.mxu0 0.0
    %1811 = vmatprep.subr.mxu0 0.0
    %1812 = vmatpush1.msra.mxu0 0.0
    %1813 = vmatprep.subr.mxu0 0.0
    %1814 = vmatpush1.msra.mxu0 0.0
    %1815 = vmatprep.subr.mxu0 0.0
    %1816 = vmatpush1.msra.mxu0 0.0
    %1817 = vmatprep.mubr.f32.mxu0 0.0
    %1818 = vmatmul.mubr.f32.gmra.mrb[0].mxu0 %v1748
    %v1819 = vpop.f32.mrb[0].mxu0
    %v1820 = vadd.f32 %v1738, %v1819
    %v1821 = vpop.f32.mrb[0].mxu0
    %1822 = vmatprep.mubr.f32.mxu0 0.0
    %1823 = vmatmul.mubr.f32.gmra.mrb[0].mxu0 %v1751
    %v1824 = vpop.f32.mrb[0].mxu0
    %v1825 = vadd.f32 %v1738, %v1824
    %v1826 = vpop.f32.mrb[0].mxu0
    %1827 = vdwg.mxu0
    %v1828 = vadd.f32 %v18, %v1820
    %v1829 = vadd.f32 %v19, %v1825
    %v1830 = vsel %vm32, %v1828, 0.0
    %1831 = vadd.xlane.f32.xlu0 %v1830
    %v1832 = vpop.xlane.xlu0 %1831
    %v1833 = vsel %vm32, %v1829, 0.0
    %1834 = vadd.xlane.f32.xlu0 %v1833
    %v1835 = vpop.xlane.xlu0 %1834
    %v1836 = vmul.f32 %v1832, %v39
    %v1837 = vmul.f32 %v1835, %v39
    %v1838 = vsub.f32 %v1828, %v1836
    %v1839 = vsub.f32 %v1829, %v1837
    %v1840 = vmul.f32 %v1838, %v1838
    %v1841 = vmul.f32 %v1839, %v1839
    %v1842 = vsel %vm32, %v1840, 0.0
    %1843 = vadd.xlane.f32.xlu0 %v1842
    %v1844 = vpop.xlane.xlu0 %1843
    %v1845 = vsel %vm32, %v1841, 0.0
    %1846 = vadd.xlane.f32.xlu0 %v1845
    %v1847 = vpop.xlane.xlu0 %1846
    %v1848 = vmul.f32 %v1844, %v39
    %v1849 = vmul.f32 %v1847, %v39
    %v1850 = vadd.f32 %v1848, 1e-05
    %v1851 = vadd.f32 %v1849, 1e-05
    %v1852 = vrsqrt.pop %v1850
    %v1853 = vrsqrt.pop %v1851
    %v1854 = vmul.f32 %v1838, %v1852
    %v1855 = vmul.f32 %v1839, %v1853
    %v1856 = vlaneseq
    %v1857 = vshrl.u32 %v1856, 7
    %v1858 = vsub.s32 2, %v1857
    %v1859 = vrot.slane %v23, %v1858
    %v1860 = vmul.f32 %v1854, %v1859
    %v1861 = vmul.f32 %v1855, %v1859
    %v1862 = vlaneseq
    %v1863 = vshrl.u32 %v1862, 7
    %v1864 = vsub.s32 3, %v1863
    %v1865 = vrot.slane %v23, %v1864
    %v1866 = vadd.f32 %v1860, %v1865
    %v1867 = vadd.f32 %v1861, %v1865
    %v1868 = vlaneseq
    %v1869 = vshrl.u32 %v1868, 7
    %v1870 = vsub.s32 6, %v1869
    %v1871 = vrot.slane %v23, %v1870
    %1872 = vrot.lane.b32.xlu0 %v21, 64
    %v1873 = vpop.permute.xlu0 %1872
    %1874 = vrot.lane.b32.xlu0 %v22, 64
    %v1875 = vpop.permute.xlu0 %1874
    %v1879 = vsel %vm32, %v1866, 0
    %v1882 = vsel %vm32, %v1867, 0
    %1884 = vmatprep.subr.mxu0 0.0
    %1885 = vmatpush1.msra.mxu0 %v1873
    %1886 = vmatprep.subr.mxu0 0.0
    %1887 = vmatpush1.msra.mxu0 %v1875
    %1888 = vmatprep.subr.mxu0 0.0
    %1889 = vmatpush1.msra.mxu0 0.0
    %1890 = vmatprep.subr.mxu0 0.0
    %1891 = vmatpush1.msra.mxu0 0.0
    %1892 = vmatprep.subr.mxu0 0.0
    %1893 = vmatpush1.msra.mxu0 0.0
    %1894 = vmatprep.subr.mxu0 0.0
    %1895 = vmatpush1.msra.mxu0 0.0
    %1896 = vmatprep.subr.mxu0 0.0
    %1897 = vmatpush1.msra.mxu0 0.0
    %1898 = vmatprep.subr.mxu0 0.0
    %1899 = vmatpush1.msra.mxu0 0.0
    %1900 = vmatprep.subr.mxu0 0.0
    %1901 = vmatpush1.msra.mxu0 0.0
    %1902 = vmatprep.subr.mxu0 0.0
    %1903 = vmatpush1.msra.mxu0 0.0
    %1904 = vmatprep.subr.mxu0 0.0
    %1905 = vmatpush1.msra.mxu0 0.0
    %1906 = vmatprep.subr.mxu0 0.0
    %1907 = vmatpush1.msra.mxu0 0.0
    %1908 = vmatprep.subr.mxu0 0.0
    %1909 = vmatpush1.msra.mxu0 0.0
    %1910 = vmatprep.subr.mxu0 0.0
    %1911 = vmatpush1.msra.mxu0 0.0
    %1912 = vmatprep.subr.mxu0 0.0
    %1913 = vmatpush1.msra.mxu0 0.0
    %1914 = vmatprep.subr.mxu0 0.0
    %1915 = vmatpush1.msra.mxu0 0.0
    %1916 = vmatprep.subr.mxu0 0.0
    %1917 = vmatpush1.msra.mxu0 0.0
    %1918 = vmatprep.subr.mxu0 0.0
    %1919 = vmatpush1.msra.mxu0 0.0
    %1920 = vmatprep.subr.mxu0 0.0
    %1921 = vmatpush1.msra.mxu0 0.0
    %1922 = vmatprep.subr.mxu0 0.0
    %1923 = vmatpush1.msra.mxu0 0.0
    %1924 = vmatprep.subr.mxu0 0.0
    %1925 = vmatpush1.msra.mxu0 0.0
    %1926 = vmatprep.subr.mxu0 0.0
    %1927 = vmatpush1.msra.mxu0 0.0
    %1928 = vmatprep.subr.mxu0 0.0
    %1929 = vmatpush1.msra.mxu0 0.0
    %1930 = vmatprep.subr.mxu0 0.0
    %1931 = vmatpush1.msra.mxu0 0.0
    %1932 = vmatprep.subr.mxu0 0.0
    %1933 = vmatpush1.msra.mxu0 0.0
    %1934 = vmatprep.subr.mxu0 0.0
    %1935 = vmatpush1.msra.mxu0 0.0
    %1936 = vmatprep.subr.mxu0 0.0
    %1937 = vmatpush1.msra.mxu0 0.0
    %1938 = vmatprep.subr.mxu0 0.0
    %1939 = vmatpush1.msra.mxu0 0.0
    %1940 = vmatprep.subr.mxu0 0.0
    %1941 = vmatpush1.msra.mxu0 0.0
    %1942 = vmatprep.subr.mxu0 0.0
    %1943 = vmatpush1.msra.mxu0 0.0
    %1944 = vmatprep.subr.mxu0 0.0
    %1945 = vmatpush1.msra.mxu0 0.0
    %1946 = vmatprep.subr.mxu0 0.0
    %1947 = vmatpush1.msra.mxu0 0.0
    %1948 = vmatprep.mubr.f32.mxu0 0.0
    %1949 = vmatmul.mubr.f32.gmra.mrb[0].mxu0 %v1879
    %v1950 = vpop.f32.mrb[0].mxu0
    %v1951 = vadd.f32 %v1871, %v1950
    %v1952 = vpop.f32.mrb[0].mxu0
    %1953 = vmatprep.mubr.f32.mxu0 0.0
    %1954 = vmatmul.mubr.f32.gmra.mrb[0].mxu0 %v1882
    %v1955 = vpop.f32.mrb[0].mxu0
    %v1956 = vadd.f32 %v1871, %v1955
    %v1957 = vpop.f32.mrb[0].mxu0
    %1958 = vdwg.mxu0
    %v1959 = vmax.f32 %v1951, 0.0
    %v1960 = vmax.f32 %v1956, 0.0
    %v1961 = vlaneseq
    %v1962 = vshrl.u32 %v1961, 7
    %v1963 = vsub.s32 5, %v1962
    %v1964 = vrot.slane %v23, %v1963
    %vm1965 = vcmask 523264
    %v1967 = vsel %vm1965, %v1959, 0
    %v1970 = vsel %vm1965, %v1960, 0
    %1972 = vmatprep.subr.mxu0 0.0
    %1973 = vmatpush1.msra.mxu0 %v24
    %1974 = vmatprep.subr.mxu0 0.0
    %1975 = vmatpush1.msra.mxu0 %v25
    %1976 = vmatprep.subr.mxu0 0.0
    %1977 = vmatpush1.msra.mxu0 %v26
    %1978 = vmatprep.subr.mxu0 0.0
    %1979 = vmatpush1.msra.mxu0 %v27
    %1980 = vmatprep.subr.mxu0 0.0
    %1981 = vmatpush1.msra.mxu0 %v28
    %1982 = vmatprep.subr.mxu0 0.0
    %1983 = vmatpush1.msra.mxu0 %v29
    %1984 = vmatprep.subr.mxu0 0.0
    %1985 = vmatpush1.msra.mxu0 %v30
    %1986 = vmatprep.subr.mxu0 0.0
    %1987 = vmatpush1.msra.mxu0 %v31
    %1988 = vmatprep.subr.mxu0 0.0
    %1989 = vmatpush1.msra.mxu0 0.0
    %1990 = vmatprep.subr.mxu0 0.0
    %1991 = vmatpush1.msra.mxu0 0.0
    %1992 = vmatprep.subr.mxu0 0.0
    %1993 = vmatpush1.msra.mxu0 0.0
    %1994 = vmatprep.subr.mxu0 0.0
    %1995 = vmatpush1.msra.mxu0 0.0
    %1996 = vmatprep.subr.mxu0 0.0
    %1997 = vmatpush1.msra.mxu0 0.0
    %1998 = vmatprep.subr.mxu0 0.0
    %1999 = vmatpush1.msra.mxu0 0.0
    %2000 = vmatprep.subr.mxu0 0.0
    %2001 = vmatpush1.msra.mxu0 0.0
    %2002 = vmatprep.subr.mxu0 0.0
    %2003 = vmatpush1.msra.mxu0 0.0
    %2004 = vmatprep.subr.mxu0 0.0
    %2005 = vmatpush1.msra.mxu0 0.0
    %2006 = vmatprep.subr.mxu0 0.0
    %2007 = vmatpush1.msra.mxu0 0.0
    %2008 = vmatprep.subr.mxu0 0.0
    %2009 = vmatpush1.msra.mxu0 0.0
    %2010 = vmatprep.subr.mxu0 0.0
    %2011 = vmatpush1.msra.mxu0 0.0
    %2012 = vmatprep.subr.mxu0 0.0
    %2013 = vmatpush1.msra.mxu0 0.0
    %2014 = vmatprep.subr.mxu0 0.0
    %2015 = vmatpush1.msra.mxu0 0.0
    %2016 = vmatprep.subr.mxu0 0.0
    %2017 = vmatpush1.msra.mxu0 0.0
    %2018 = vmatprep.subr.mxu0 0.0
    %2019 = vmatpush1.msra.mxu0 0.0
    %2020 = vmatprep.subr.mxu0 0.0
    %2021 = vmatpush1.msra.mxu0 0.0
    %2022 = vmatprep.subr.mxu0 0.0
    %2023 = vmatpush1.msra.mxu0 0.0
    %2024 = vmatprep.subr.mxu0 0.0
    %2025 = vmatpush1.msra.mxu0 0.0
    %2026 = vmatprep.subr.mxu0 0.0
    %2027 = vmatpush1.msra.mxu0 0.0
    %2028 = vmatprep.subr.mxu0 0.0
    %2029 = vmatpush1.msra.mxu0 0.0
    %2030 = vmatprep.subr.mxu0 0.0
    %2031 = vmatpush1.msra.mxu0 0.0
    %2032 = vmatprep.subr.mxu0 0.0
    %2033 = vmatpush1.msra.mxu0 0.0
    %2034 = vmatprep.subr.mxu0 0.0
    %2035 = vmatpush1.msra.mxu0 0.0
    %2036 = vmatprep.mubr.f32.mxu0 0.0
    %2037 = vmatmul.mubr.f32.gmra.mrb[0].mxu0 %v1967
    %v2038 = vpop.f32.mrb[0].mxu0
    %v2039 = vadd.f32 %v1964, %v2038
    %v2040 = vpop.f32.mrb[0].mxu0
    %2041 = vmatprep.mubr.f32.mxu0 0.0
    %2042 = vmatmul.mubr.f32.gmra.mrb[0].mxu0 %v1970
    %v2043 = vpop.f32.mrb[0].mxu0
    %v2044 = vadd.f32 %v1964, %v2043
    %v2045 = vpop.f32.mrb[0].mxu0
    %2046 = vdwg.mxu0
    %v2047 = vadd.f32 %v1828, %v2039
    %v2048 = vadd.f32 %v1829, %v2044
    %2049 = vst.msk [vmem:[#allocation2] sm:$0xff] %vm32, %v2047
    %2050 = vst.msk [vmem:[#allocation2 + $0x8] sm:$0xff] %vm32, %v2048
    // Predicated region
    $region18: #{tpu_custom_call.1} parent=1 // pred_check
      _
    $region19: #{tpu_custom_call.1} parent=1 // pred_check_branch
      %2052 = sbr.rel (0) target = $region21
    $region20: #{tpu_custom_call.1} parent=1 // pred_region
      %s2054 = ssub.s32 256, 256
      %2055 = vsyncadd [#allocation3], %s2054
      %s2056 = sshll.u32 [#allocation2], 4
      %s2057 = int_to_ptr.vmem [resolvable:$true] %s2056
      %2062 = dma.vmem_to_hbm [thread:$0]  %s2057, 256, %s4, [#allocation3], 128, 128, 8
    $region21: #{tpu_custom_call.1} parent=1 // pred_fallthru
      _
    // Predicated region
    $region22: #{tpu_custom_call.1} parent=1 // pred_check
      _
    $region23: #{tpu_custom_call.1} parent=1 // pred_check_branch
      %2064 = sbr.rel (0) target = $region25
    $region24: #{tpu_custom_call.1} parent=1 // pred_region
      %2065 = dma.done [#allocation3], 256
    $region25: #{tpu_custom_call.1} parent=1 // pred_fallthru
      _
    %2066 = vsyncpa [#allocation3], 1

</llo_original>
